<compile_context>
chip_gen: v7x
topology: tpu7x:2x2x1
jax: 0.10.0
libtpu: 0.0.40
codegen_flags: <defaults>
</compile_context>

<pallas_src>
import functools

import jax
import jax.numpy as jnp
from jax.experimental import pallas as pl
from jax.experimental.pallas import tpu as pltpu

NUM_CLASSES = 5
SEQ_LEN = 8
HIDDEN = 512
IN_PAD = 16       # [ sequence(8) | one-hot(label)(5) | pad(3) ]
HEAD_PAD = 8      # [ validity(1) | aux(5) | pad(2) ]
LEAK = 0.2        # LeakyReLU negative slope


def _discriminator_kernel(seq_ref, lbl_ref, w1p_ref, w23_ref, wh_ref, bpk_ref,
                          out_ref):
    tm = seq_ref.shape[0]

    # --- layer 1: Linear(13 -> 512) with embedding lookup folded in ----------
    # seq_ref is (tm, 16) bf16 with zeros in columns 8..15; one vselect drops a
    # 1.0 into the column matching the label, giving d_in = [seq | onehot].
    col = jax.lax.broadcasted_iota(jnp.int32, (tm, IN_PAD), 1)
    d_in = jnp.where(col == lbl_ref[...] + SEQ_LEN,
                     jnp.asarray(1.0, jnp.bfloat16), seq_ref[...])
    h = jnp.dot(d_in, w1p_ref[...], preferred_element_type=jnp.float32)
    h = jnp.maximum(h, LEAK * h)                                   # LeakyReLU

    # --- layer 2: Linear(512 -> 512) + Dropout(0.4) + LeakyReLU(0.2) ---------
    # TODO(synk): nn.Dropout(0.4) is identity in eval mode; training-mode
    # dropout would use pltpu.prng_seed + pltpu.stateful_bernoulli.
    h = jnp.dot(h.astype(jnp.bfloat16), w23_ref[0],
                preferred_element_type=jnp.float32) + bpk_ref[0:1, :]
    h = jnp.maximum(h, LEAK * h)

    # --- layer 3: Linear(512 -> 512) + Dropout(0.4) + LeakyReLU(0.2) ---------
    h = jnp.dot(h.astype(jnp.bfloat16), w23_ref[1],
                preferred_element_type=jnp.float32) + bpk_ref[1:2, :]
    h = jnp.maximum(h, LEAK * h)

    # --- heads: [validity | aux] as one (512, 8) matmul, one packed store ----
    head = jnp.dot(h.astype(jnp.bfloat16), wh_ref[...],
                   preferred_element_type=jnp.float32) + bpk_ref[2:3, 0:HEAD_PAD]
    hcol = jax.lax.broadcasted_iota(jnp.int32, head.shape, 1)
    out_ref[...] = jnp.where(hcol == 0, jax.nn.sigmoid(head), head)


def init_raw_params(key):
    """PyTorch-equivalent f32 parameters (fan_in uniform Linear init)."""
    ks = jax.random.split(key, 11)

    def linear(kw, kb, fan_in, fan_out):
        bound = 1.0 / float(fan_in) ** 0.5
        w = jax.random.uniform(kw, (fan_in, fan_out), jnp.float32, -bound, bound)
        b = jax.random.uniform(kb, (fan_out,), jnp.float32, -bound, bound)
        return w, b

    emb = jax.random.normal(ks[0], (NUM_CLASSES, NUM_CLASSES), jnp.float32)
    w1, b1 = linear(ks[1], ks[2], SEQ_LEN + NUM_CLASSES, HIDDEN)
    w2, b2 = linear(ks[3], ks[4], HIDDEN, HIDDEN)
    w3, b3 = linear(ks[5], ks[6], HIDDEN, HIDDEN)
    wv, bv = linear(ks[7], ks[8], HIDDEN, 1)
    wa, ba = linear(ks[9], ks[10], HIDDEN, NUM_CLASSES)
    return dict(emb=emb, w1=w1, b1=b1, w2=w2, b2=b2, w3=w3, b3=b3,
                wv=wv, bv=bv, wa=wa, ba=ba)


def pack_params(raw):
    """Pack/fold raw params into the kernel-facing layout (done once)."""
    f32, bf16 = jnp.float32, jnp.bfloat16
    # Layer-1 weight with the embedding + b1 folded into per-label rows:
    #   rows 0..7  = W1[:8]           (sequence part)
    #   rows 8..12 = emb @ W1[8:] + b1 (selected by the in-kernel one-hot)
    #   rows 13..15 = 0               (padding, never selected)
    tab = raw["emb"] @ raw["w1"][SEQ_LEN:, :] + raw["b1"][None, :]
    w1p = jnp.concatenate(
        [raw["w1"][:SEQ_LEN, :], tab,
         jnp.zeros((IN_PAD - SEQ_LEN - NUM_CLASSES, HIDDEN), f32)], axis=0
    ).astype(bf16)                                                 # (16, 512)
    # The two big 512x512 weights as one stacked DMA.
    w23 = jnp.stack([raw["w2"], raw["w3"]]).astype(bf16)           # (2, 512, 512)
    # Validity + aux head weights packed column-wise: [w_val | w_aux | 0 0].
    wh = jnp.concatenate(
        [raw["wv"], raw["wa"],
         jnp.zeros((HIDDEN, HEAD_PAD - 1 - NUM_CLASSES), f32)], axis=1
    ).astype(bf16)                                                 # (512, 8)
    # All remaining small vectors packed into one f32 array (one DMA).
    bh = jnp.concatenate(
        [raw["bv"], raw["ba"], jnp.zeros((HIDDEN - 1 - NUM_CLASSES,), f32)])
    bpk = jnp.stack([raw["b2"], raw["b3"], bh])                    # (3, 512)
    return dict(w1p=w1p, w23=w23, wh=wh, bpk=bpk)


def _round_up(x, m):
    return (x + m - 1) // m * m


@functools.partial(jax.jit, static_argnames=("tm",))
def discriminator_forward(packed, sequence, labels, tm=None):
    B = sequence.shape[0]
    if tm is None:
        # Multiple of 8 (sublane); cap at 512 (multiple of 128/256 for the
        # v5e/v6e MXU, ~1 MiB of live activations -> safe on v7x 64 MiB VMEM).
        tm = min(512, _round_up(B, 8))
    b_pad = _round_up(B, tm)
    grid = (b_pad // tm,)

    # Batch pad + bf16 cast + zero-pad sequence out to IN_PAD lanes, one op.
    seq_pad = jnp.zeros((b_pad, IN_PAD), jnp.bfloat16)
    seq_pad = seq_pad.at[:B, :SEQ_LEN].set(sequence.astype(jnp.bfloat16))
    lbl_pad = jnp.zeros((b_pad, 1), jnp.int32)
    lbl_pad = lbl_pad.at[:B, 0].set(labels.astype(jnp.int32))

    args = (seq_pad, lbl_pad, packed["w1p"], packed["w23"], packed["wh"],
            packed["bpk"])

    flops = 2 * b_pad * (IN_PAD * HIDDEN + 2 * HIDDEN * HIDDEN
                         + HIDDEN * HEAD_PAD)
    nbytes = sum(int(a.size) * a.dtype.itemsize for a in args)
    nbytes += b_pad * HEAD_PAD * 4
    cost = pl.CostEstimate(flops=flops, transcendentals=b_pad * HEAD_PAD,
                           bytes_accessed=nbytes)

    out = pl.pallas_call(
        _discriminator_kernel,
        out_shape=jax.ShapeDtypeStruct((b_pad, HEAD_PAD), jnp.float32),
        grid_spec=pltpu.PrefetchScalarGridSpec(
            num_scalar_prefetch=0,
            grid=grid,
            in_specs=[
                # batch-blocked activations
                pl.BlockSpec((tm, IN_PAD), lambda i: (i, 0)),
                pl.BlockSpec((tm, 1), lambda i: (i, 0)),
                # weights/biases: constant index_map -> DMA'd once, resident
                pl.BlockSpec((IN_PAD, HIDDEN), lambda i: (0, 0)),
                pl.BlockSpec((2, HIDDEN, HIDDEN), lambda i: (0, 0, 0)),
                pl.BlockSpec((HIDDEN, HEAD_PAD), lambda i: (0, 0)),
                pl.BlockSpec((3, HIDDEN), lambda i: (0, 0)),
            ],
            out_specs=pl.BlockSpec((tm, HEAD_PAD), lambda i: (i, 0)),
        ),
        compiler_params=pltpu.CompilerParams(
            dimension_semantics=("parallel",)),
        cost_estimate=cost,
    )(*args)

    validity = out[:B, 0:1]
    aux = out[:B, 1:1 + NUM_CLASSES]
    return validity, aux


def _reference_matched(packed, sequence, labels):
    """Pure-JAX mirror of the kernel's exact mixed-precision arithmetic."""
    f32 = jnp.float32
    onehot = (labels[:, None] == jnp.arange(IN_PAD - SEQ_LEN)[None, :])
    d_in = jnp.concatenate(
        [sequence.astype(jnp.bfloat16), onehot.astype(jnp.bfloat16)], axis=-1)
    h = jnp.dot(d_in, packed["w1p"], preferred_element_type=f32)
    h = jnp.maximum(h, LEAK * h)
    h = jnp.dot(h.astype(jnp.bfloat16), packed["w23"][0],
                preferred_element_type=f32) + packed["bpk"][0:1, :]
    h = jnp.maximum(h, LEAK * h)
    h = jnp.dot(h.astype(jnp.bfloat16), packed["w23"][1],
                preferred_element_type=f32) + packed["bpk"][1:2, :]
    h = jnp.maximum(h, LEAK * h)
    head = jnp.dot(h.astype(jnp.bfloat16), packed["wh"],
                   preferred_element_type=f32) + packed["bpk"][2:3, :HEAD_PAD]
    validity = jax.nn.sigmoid(head[:, 0:1])
    aux = head[:, 1:1 + NUM_CLASSES]
    return validity, aux


def _reference_f32(raw, sequence, labels):
    """Exact f32 reference mirroring the PyTorch module (eval-mode dropout)."""
    emb = raw["emb"][labels]
    x = jnp.concatenate([sequence, emb], axis=-1)
    h = x @ raw["w1"] + raw["b1"]
    h = jnp.maximum(h, LEAK * h)
    h = h @ raw["w2"] + raw["b2"]
    h = jnp.maximum(h, LEAK * h)
    h = h @ raw["w3"] + raw["b3"]
    h = jnp.maximum(h, LEAK * h)
    validity = jax.nn.sigmoid(h @ raw["wv"] + raw["bv"])
    aux = h @ raw["wa"] + raw["ba"]
    return validity, aux


def _check(packed, raw, sequence, labels, validity, aux):
    B = sequence.shape[0]
    assert validity.shape == (B, 1) and aux.shape == (B, NUM_CLASSES)
    # Tight check against a reference using the identical bf16/f32 scheme.
    ref_v, ref_a = _reference_matched(packed, sequence, labels)
    assert jnp.allclose(validity, ref_v, atol=1e-3, rtol=1e-3)
    assert jnp.allclose(aux, ref_a, atol=1e-3, rtol=1e-3)
    # Semantic check vs. the exact-f32 PyTorch-equivalent forward; the residual
    # comes only from bf16 weight/input rounding before the MXU.
    f32_v, f32_a = _reference_f32(raw, sequence, labels)
    max_dev = max(float(jnp.max(jnp.abs(validity - f32_v))),
                  float(jnp.max(jnp.abs(aux - f32_a))))
    assert max_dev < 0.15, f"bf16 deviation from f32 reference too large: {max_dev}"


if __name__ == "__main__":
    key = jax.random.PRNGKey(0)
    k_params, k_seq, k_lbl, k_seq2, k_lbl2 = jax.random.split(key, 5)

    raw = init_raw_params(k_params)
    packed = pack_params(raw)

    # Small demo batch (single grid step).
    B = 8
    sequence = jax.random.normal(k_seq, (B, SEQ_LEN), jnp.float32)
    labels = jax.random.randint(k_lbl, (B,), 0, NUM_CLASSES, jnp.int32)
    validity, aux = discriminator_forward(packed, sequence, labels)
    jax.block_until_ready((validity, aux))
    _check(packed, raw, sequence, labels, validity, aux)

    # Exercise the multi-step batch grid (grid=(2,)) with a forced small tile.
    B2 = 16
    sequence2 = jax.random.normal(k_seq2, (B2, SEQ_LEN), jnp.float32)
    labels2 = jax.random.randint(k_lbl2, (B2,), 0, NUM_CLASSES, jnp.int32)
    validity2, aux2 = discriminator_forward(packed, sequence2, labels2, tm=8)
    jax.block_until_ready((validity2, aux2))
    _check(packed, raw, sequence2, labels2, validity2, aux2)

    print("KERNEL_OK")
</pallas_src>

<mosaic_0001>
module attributes {stable_mosaic.version = 11 : i64} {
  func.func @_discriminator_kernel(%arg0: i32, %arg1: memref<8x16xbf16, #tpu.memory_space<vmem>>, %arg2: memref<8x1xi32, #tpu.memory_space<vmem>>, %arg3: memref<16x512xbf16, #tpu.memory_space<vmem>>, %arg4: memref<2x512x512xbf16, #tpu.memory_space<vmem>>, %arg5: memref<512x8xbf16, #tpu.memory_space<vmem>>, %arg6: memref<3x512xf32, #tpu.memory_space<vmem>>, %arg7: memref<8x8xf32, #tpu.memory_space<vmem>>) attributes {dimension_semantics = [#tpu.dimension_semantics<parallel>], iteration_bounds = array<i64: 1>, scalar_prefetch = 0 : i64, scratch_operands = 0 : i64, tpu.core_type = #tpu.core_type<tc>, window_params = [{transform_indices = @transform_0, window_bounds = array<i64: 8, 16>}, {transform_indices = @transform_1, window_bounds = array<i64: 8, 1>}, {pipeline_mode = #tpu.pipeline_mode<synchronous>, transform_indices = @transform_2, window_bounds = array<i64: 16, 512>}, {pipeline_mode = #tpu.pipeline_mode<synchronous>, transform_indices = @transform_3, window_bounds = array<i64: 2, 512, 512>}, {pipeline_mode = #tpu.pipeline_mode<synchronous>, transform_indices = @transform_4, window_bounds = array<i64: 512, 8>}, {pipeline_mode = #tpu.pipeline_mode<synchronous>, transform_indices = @transform_5, window_bounds = array<i64: 3, 512>}, {transform_indices = @transform_6, window_bounds = array<i64: 8, 8>}]} {
    %0 = tpu.iota {dimensions = array<i32: 1>} : vector<8x16xi32>
    %c0 = arith.constant 0 : index
    %c0_0 = arith.constant 0 : index
    %1 = vector.load %arg2[%c0, %c0_0] : memref<8x1xi32, #tpu.memory_space<vmem>>, vector<8x1xi32>
    %c8_i32 = arith.constant 8 : i32
    %2 = vector.broadcast %c8_i32 : i32 to vector<8x1xi32>
    %3 = arith.addi %1, %2 : vector<8x1xi32>
    %4 = vector.broadcast %3 : vector<8x1xi32> to vector<8x16xi32>
    %5 = arith.cmpi eq, %0, %4 : vector<8x16xi32>
    %c0_1 = arith.constant 0 : index
    %c0_2 = arith.constant 0 : index
    %6 = vector.load %arg1[%c0_1, %c0_2] : memref<8x16xbf16, #tpu.memory_space<vmem>>, vector<8x16xbf16>
    %cst = arith.constant 1.000000e+00 : bf16
    %7 = vector.broadcast %cst : bf16 to vector<8x16xbf16>
    %8 = arith.select %5, %7, %6 : vector<8x16xi1>, vector<8x16xbf16>
    %c0_3 = arith.constant 0 : index
    %c0_4 = arith.constant 0 : index
    %9 = vector.load %arg3[%c0_3, %c0_4] : memref<16x512xbf16, #tpu.memory_space<vmem>>, vector<16x512xbf16>
    %cst_5 = arith.constant dense<0.000000e+00> : vector<8x512xf32>
    %10 = tpu.matmul %8, %9, %cst_5 {dimension_numbers = #tpu.dot_dimension_numbers<[1], [0], [0], [1], [0, 0, 1, 1], [], []>} : vector<8x16xbf16>, vector<16x512xbf16>, vector<8x512xf32> -> vector<8x512xf32>
    %cst_6 = arith.constant 2.000000e-01 : f32
    %11 = vector.broadcast %cst_6 : f32 to vector<8x512xf32>
    %12 = arith.mulf %11, %10 : vector<8x512xf32>
    %13 = arith.maximumf %10, %12 : vector<8x512xf32>
    %14 = arith.truncf %13 : vector<8x512xf32> to vector<8x512xbf16>
    %c0_7 = arith.constant 0 : index
    %c0_8 = arith.constant 0 : index
    %c0_9 = arith.constant 0 : index
    %15 = vector.load %arg4[%c0_7, %c0_8, %c0_9] : memref<2x512x512xbf16, #tpu.memory_space<vmem>>, vector<1x512x512xbf16>
    %16 = vector.shape_cast %15 : vector<1x512x512xbf16> to vector<512x512xbf16>
    %cst_10 = arith.constant dense<0.000000e+00> : vector<8x512xf32>
    %17 = tpu.matmul %14, %16, %cst_10 {dimension_numbers = #tpu.dot_dimension_numbers<[1], [0], [0], [1], [0, 0, 1, 1], [], []>} : vector<8x512xbf16>, vector<512x512xbf16>, vector<8x512xf32> -> vector<8x512xf32>
    %c0_11 = arith.constant 0 : index
    %c0_12 = arith.constant 0 : index
    %18 = vector.load %arg6[%c0_11, %c0_12] : memref<3x512xf32, #tpu.memory_space<vmem>>, vector<1x512xf32>
    %19 = vector.broadcast %18 : vector<1x512xf32> to vector<8x512xf32>
    %20 = arith.addf %17, %19 : vector<8x512xf32>
    %cst_13 = arith.constant 2.000000e-01 : f32
    %21 = vector.broadcast %cst_13 : f32 to vector<8x512xf32>
    %22 = arith.mulf %21, %20 : vector<8x512xf32>
    %23 = arith.maximumf %20, %22 : vector<8x512xf32>
    %24 = arith.truncf %23 : vector<8x512xf32> to vector<8x512xbf16>
    %c1 = arith.constant 1 : index
    %c0_14 = arith.constant 0 : index
    %c0_15 = arith.constant 0 : index
    %25 = vector.load %arg4[%c1, %c0_14, %c0_15] : memref<2x512x512xbf16, #tpu.memory_space<vmem>>, vector<1x512x512xbf16>
    %26 = vector.shape_cast %25 : vector<1x512x512xbf16> to vector<512x512xbf16>
    %cst_16 = arith.constant dense<0.000000e+00> : vector<8x512xf32>
    %27 = tpu.matmul %24, %26, %cst_16 {dimension_numbers = #tpu.dot_dimension_numbers<[1], [0], [0], [1], [0, 0, 1, 1], [], []>} : vector<8x512xbf16>, vector<512x512xbf16>, vector<8x512xf32> -> vector<8x512xf32>
    %c1_17 = arith.constant 1 : index
    %c0_18 = arith.constant 0 : index
    %28 = vector.load %arg6[%c1_17, %c0_18] : memref<3x512xf32, #tpu.memory_space<vmem>>, vector<1x512xf32>
    %29 = vector.broadcast %28 : vector<1x512xf32> to vector<8x512xf32>
    %30 = arith.addf %27, %29 : vector<8x512xf32>
    %cst_19 = arith.constant 2.000000e-01 : f32
    %31 = vector.broadcast %cst_19 : f32 to vector<8x512xf32>
    %32 = arith.mulf %31, %30 : vector<8x512xf32>
    %33 = arith.maximumf %30, %32 : vector<8x512xf32>
    %34 = arith.truncf %33 : vector<8x512xf32> to vector<8x512xbf16>
    %c0_20 = arith.constant 0 : index
    %c0_21 = arith.constant 0 : index
    %35 = vector.load %arg5[%c0_20, %c0_21] : memref<512x8xbf16, #tpu.memory_space<vmem>>, vector<512x8xbf16>
    %cst_22 = arith.constant dense<0.000000e+00> : vector<8x8xf32>
    %36 = tpu.matmul %34, %35, %cst_22 {dimension_numbers = #tpu.dot_dimension_numbers<[1], [0], [0], [1], [0, 0, 1, 1], [], []>} : vector<8x512xbf16>, vector<512x8xbf16>, vector<8x8xf32> -> vector<8x8xf32>
    %c2 = arith.constant 2 : index
    %c0_23 = arith.constant 0 : index
    %37 = vector.load %arg6[%c2, %c0_23] : memref<3x512xf32, #tpu.memory_space<vmem>>, vector<1x8xf32>
    %38 = vector.broadcast %37 : vector<1x8xf32> to vector<8x8xf32>
    %39 = arith.addf %36, %38 : vector<8x8xf32>
    %40 = tpu.iota {dimensions = array<i32: 1>} : vector<8x8xi32>
    %c0_i32 = arith.constant 0 : i32
    %41 = vector.broadcast %c0_i32 : i32 to vector<8x8xi32>
    %42 = arith.cmpi eq, %40, %41 : vector<8x8xi32>
    %43 = arith.negf %39 : vector<8x8xf32>
    %44 = math.exp %43 : vector<8x8xf32>
    %cst_24 = arith.constant 1.000000e+00 : f32
    %45 = vector.broadcast %cst_24 : f32 to vector<8x8xf32>
    %46 = arith.addf %45, %44 : vector<8x8xf32>
    %47 = arith.divf %45, %46 : vector<8x8xf32>
    %48 = arith.select %42, %47, %39 : vector<8x8xi1>, vector<8x8xf32>
    %c0_25 = arith.constant 0 : index
    %c0_26 = arith.constant 0 : index
    %49 = vector.load %arg7[%c0_25, %c0_26] : memref<8x8xf32, #tpu.memory_space<vmem>>, vector<8x8xf32>
    tpu.vector_store %arg7[%c0_25, %c0_26], %48 {strides = array<i32>} : memref<8x8xf32, #tpu.memory_space<vmem>>, vector<8x8xf32>,
    return
  }
  func.func @transform_0(%arg0: i32) -> (i32, i32) {
    %c0_i32 = arith.constant 0 : i32
    %c0_i32_0 = arith.constant 0 : i32
    return %arg0, %c0_i32 : i32, i32
  }
  func.func @transform_1(%arg0: i32) -> (i32, i32) {
    %c0_i32 = arith.constant 0 : i32
    %c0_i32_0 = arith.constant 0 : i32
    return %arg0, %c0_i32 : i32, i32
  }
  func.func @transform_2(%arg0: i32) -> (i32, i32) {
    %c0_i32 = arith.constant 0 : i32
    %c0_i32_0 = arith.constant 0 : i32
    %c0_i32_1 = arith.constant 0 : i32
    return %c0_i32, %c0_i32_0 : i32, i32
  }
  func.func @transform_3(%arg0: i32) -> (i32, i32, i32) {
    %c0_i32 = arith.constant 0 : i32
    %c0_i32_0 = arith.constant 0 : i32
    %c0_i32_1 = arith.constant 0 : i32
    %c0_i32_2 = arith.constant 0 : i32
    return %c0_i32, %c0_i32_0, %c0_i32_1 : i32, i32, i32
  }
  func.func @transform_4(%arg0: i32) -> (i32, i32) {
    %c0_i32 = arith.constant 0 : i32
    %c0_i32_0 = arith.constant 0 : i32
    %c0_i32_1 = arith.constant 0 : i32
    return %c0_i32, %c0_i32_0 : i32, i32
  }
  func.func @transform_5(%arg0: i32) -> (i32, i32) {
    %c0_i32 = arith.constant 0 : i32
    %c0_i32_0 = arith.constant 0 : i32
    %c0_i32_1 = arith.constant 0 : i32
    return %c0_i32, %c0_i32_0 : i32, i32
  }
  func.func @transform_6(%arg0: i32) -> (i32, i32) {
    %c0_i32 = arith.constant 0 : i32
    %c0_i32_0 = arith.constant 0 : i32
    return %arg0, %c0_i32 : i32, i32
  }
}

</mosaic_0001>

<llo_original>
// kernel: discriminator_forward.1
$region0: #{discriminator_forward.1}
  #allocation0 [shape = 'u32[]', space=smem, size = 0x4, offset = 0x4, fixed_abs, tag = 'smem constant byte address 0x4 - core index']
  #allocation1 [shape = 'u32[144,128]{1,0:T(1,128)}', space=vmem, size = 0x12000, scoped, tag = 'internal scratch']
  %s0 = inlined_call_operand.vmem [shape: bf16[8,16], index: 0, kind: input, shape index: {}]
  %s1 = inlined_call_operand.vmem [shape: s32[8,1], index: 1, kind: input, shape index: {}]
  %s2 = inlined_call_operand.vmem [shape: bf16[16,512], index: 2, kind: input, shape index: {}]
  %s3 = inlined_call_operand.hbm [shape: bf16[2,512,512], index: 3, kind: input, shape index: {}]
  %s4 = inlined_call_operand.vmem [shape: bf16[512,8], index: 4, kind: input, shape index: {}]
  %s5 = inlined_call_operand.vmem [shape: f32[3,512], index: 5, kind: input, shape index: {}]
  %s6 = inlined_call_operand.vmem [shape: f32[8,8], index: 6, kind: output, shape index: {}]
  %s7 = sld [smem:[#allocation0]]
  $region38: #{discriminator_forward.1} parent=0
    _
  %s9 = ssub.s32 1, %s7
  %s10 = scalar_select 0, %s9, %s7
  $region1: #{discriminator_forward.1} parent=0
    #allocation2 [shape = 'u8[1048576]{0}', space=vmem, size = 0x100000, scoped, tag = 'input window, operand 3, single buffered']
    #allocation3 [shape = 's32[1]{0}', space=sflag, size = 0x4, scoped, tag = 'scoped memory for discriminator_forward.1']
    %11 = vsyncpa [#allocation3], 0
    // Predicated region
    $region2: #{discriminator_forward.1} parent=1 // pred_check
      _
    $region3: #{discriminator_forward.1} parent=1 // pred_check_branch
      %13 = sbr.rel (0) target = $region5
    $region4: #{discriminator_forward.1} parent=1 // pred_region
      _
    $region5: #{discriminator_forward.1} parent=1 // pred_fallthru
      _
    // Predicated region
    $region6: #{discriminator_forward.1} parent=1 // pred_check
      _
    $region7: #{discriminator_forward.1} parent=1 // pred_check_branch
      %15 = sbr.rel (0) target = $region9
    $region8: #{discriminator_forward.1} parent=1 // pred_region
      _
    $region9: #{discriminator_forward.1} parent=1 // pred_fallthru
      _
    // Predicated region
    $region10: #{discriminator_forward.1} parent=1 // pred_check
      _
    $region11: #{discriminator_forward.1} parent=1 // pred_check_branch
      %17 = sbr.rel (0) target = $region13
    $region12: #{discriminator_forward.1} parent=1 // pred_region
      _
    $region13: #{discriminator_forward.1} parent=1 // pred_fallthru
      _
    // Predicated region
    $region14: #{discriminator_forward.1} parent=1 // pred_check
      _
    $region15: #{discriminator_forward.1} parent=1 // pred_check_branch
      %19 = sbr.rel (0) target = $region17
    $region16: #{discriminator_forward.1} parent=1 // pred_region
      %s21 = ssub.s32 32768, 32768
      %22 = vsyncadd [#allocation3], %s21
      %s23 = sshll.u32 [#allocation2], 4
      %s24 = int_to_ptr.vmem [resolvable:$true] %s23
      %29 = dma.hbm_to_vmem [thread:$0]  %s3, 32768, %s24, [#allocation3], 256, 256, 16
    $region17: #{discriminator_forward.1} parent=1 // pred_fallthru
      _
    // Predicated region
    $region18: #{discriminator_forward.1} parent=1 // pred_check
      _
    $region19: #{discriminator_forward.1} parent=1 // pred_check_branch
      %31 = sbr.rel (0) target = $region21
    $region20: #{discriminator_forward.1} parent=1 // pred_region
      _
    $region21: #{discriminator_forward.1} parent=1 // pred_fallthru
      _
    // Predicated region
    $region22: #{discriminator_forward.1} parent=1 // pred_check
      _
    $region23: #{discriminator_forward.1} parent=1 // pred_check_branch
      %33 = sbr.rel (0) target = $region25
    $region24: #{discriminator_forward.1} parent=1 // pred_region
      _
    $region25: #{discriminator_forward.1} parent=1 // pred_fallthru
      _
    // Predicated region
    $region26: #{discriminator_forward.1} parent=1 // pred_check
      _
    $region27: #{discriminator_forward.1} parent=1 // pred_check_branch
      %35 = sbr.rel (0) target = $region29
    $region28: #{discriminator_forward.1} parent=1 // pred_region
      %36 = dma.done [#allocation3], 32768
    $region29: #{discriminator_forward.1} parent=1 // pred_fallthru
      _
    %v39 = vlaneseq
    %v40 = vand.u32 %v39, 127
    %v41 = vld [vmem:[%s1] sm:$0xff]
    %v42 = vadd.s32 %v41, 8
    %43 = vset.pattern.permute.xlu0 0
    %44 = vperm.xlu0 %43, %v42
    %v45 = vpop.permute.xlu0 %44
    %vm46 = vcmp.eq.s32.totalorder %v40, %v45
    %v47 = vld [vmem:[%s0] sm:$0xf]
    %vm48 = vmpackc.low %vm46, %vm46
    %v49 = vsel %vm48, 1065369472, %v47
    %v50 = vld [vmem:[%s2] sm:$0xff]
    %v51 = vld [vmem:[%s2 + $0x8] sm:$0xff]
    %v52 = vld [vmem:[%s2 + $0x10] sm:$0xff]
    %v53 = vld [vmem:[%s2 + $0x18] sm:$0xff]
    %v58 = vunpack.c.l.b16 %v50
    %v59 = vunpack.c.h.b16 %v50
    %v60 = vunpack.c.l.b16 %v51
    %v61 = vunpack.c.h.b16 %v51
    %v62 = vunpack.c.l.b16 %v52
    %v63 = vunpack.c.h.b16 %v52
    %v64 = vunpack.c.l.b16 %v53
    %v65 = vunpack.c.h.b16 %v53
    %v66 = vpack.c.b16 %v62, %v58
    %v67 = vpack.c.b16 %v63, %v59
    %v68 = vpack.c.b16 %v64, %v60
    %v69 = vpack.c.b16 %v65, %v61
    %vm74 = vcmask 130048
    %v76 = vsel %vm74, %v49, 0
    %78 = vmatprep.subr.bf16.mxu0 %v67
    %79 = vmatpush1.bf16.msra.mxu0 %v66
    %80 = vmatprep.subr.bf16.mxu0 0
    %81 = vmatpush1.bf16.msra.mxu0 0
    %82 = vmatprep.subr.bf16.mxu0 0
    %83 = vmatpush1.bf16.msra.mxu0 0
    %84 = vmatprep.subr.bf16.mxu0 0
    %85 = vmatpush1.bf16.msra.mxu0 0
    %86 = vmatprep.subr.bf16.mxu0 0
    %87 = vmatpush1.bf16.msra.mxu0 0
    %88 = vmatprep.subr.bf16.mxu0 0
    %89 = vmatpush1.bf16.msra.mxu0 0
    %90 = vmatprep.subr.bf16.mxu0 0
    %91 = vmatpush1.bf16.msra.mxu0 0
    %92 = vmatprep.subr.bf16.mxu0 0
    %93 = vmatpush1.bf16.msra.mxu0 0
    %94 = vmatprep.subr.bf16.mxu0 0
    %95 = vmatpush1.bf16.msra.mxu0 0
    %96 = vmatprep.subr.bf16.mxu0 0
    %97 = vmatpush1.bf16.msra.mxu0 0
    %98 = vmatprep.subr.bf16.mxu0 0
    %99 = vmatpush1.bf16.msra.mxu0 0
    %100 = vmatprep.subr.bf16.mxu0 0
    %101 = vmatpush1.bf16.msra.mxu0 0
    %102 = vmatprep.subr.bf16.mxu0 0
    %103 = vmatpush1.bf16.msra.mxu0 0
    %104 = vmatprep.subr.bf16.mxu0 0
    %105 = vmatpush1.bf16.msra.mxu0 0
    %106 = vmatprep.subr.bf16.mxu0 0
    %107 = vmatpush1.bf16.msra.mxu0 0
    %108 = vmatprep.subr.bf16.mxu0 0
    %109 = vmatpush1.bf16.msra.mxu0 0
    %110 = vmatprep.mubr.bf16.mxu0 0
    %111 = vmatmul.mubr.bf16.gmra.mrb[0].mxu0 %v76
    %v112 = vpop.f32.mrb[0].mxu0
    %v113 = vadd.f32 0.0, %v112
    %v114 = vpop.f32.mrb[0].mxu0
    %v115 = vadd.f32 0.0, %v114
    %v116 = vpop.f32.mrb[0].mxu0
    %v117 = vpop.f32.mrb[0].mxu0
    %118 = vdwg.mxu0
    %119 = vmatprep.subr.bf16.mxu0 %v69
    %120 = vmatpush1.bf16.msra.mxu0 %v68
    %121 = vmatprep.subr.bf16.mxu0 0
    %122 = vmatpush1.bf16.msra.mxu0 0
    %123 = vmatprep.subr.bf16.mxu0 0
    %124 = vmatpush1.bf16.msra.mxu0 0
    %125 = vmatprep.subr.bf16.mxu0 0
    %126 = vmatpush1.bf16.msra.mxu0 0
    %127 = vmatprep.subr.bf16.mxu0 0
    %128 = vmatpush1.bf16.msra.mxu0 0
    %129 = vmatprep.subr.bf16.mxu0 0
    %130 = vmatpush1.bf16.msra.mxu0 0
    %131 = vmatprep.subr.bf16.mxu0 0
    %132 = vmatpush1.bf16.msra.mxu0 0
    %133 = vmatprep.subr.bf16.mxu0 0
    %134 = vmatpush1.bf16.msra.mxu0 0
    %135 = vmatprep.subr.bf16.mxu0 0
    %136 = vmatpush1.bf16.msra.mxu0 0
    %137 = vmatprep.subr.bf16.mxu0 0
    %138 = vmatpush1.bf16.msra.mxu0 0
    %139 = vmatprep.subr.bf16.mxu0 0
    %140 = vmatpush1.bf16.msra.mxu0 0
    %141 = vmatprep.subr.bf16.mxu0 0
    %142 = vmatpush1.bf16.msra.mxu0 0
    %143 = vmatprep.subr.bf16.mxu0 0
    %144 = vmatpush1.bf16.msra.mxu0 0
    %145 = vmatprep.subr.bf16.mxu0 0
    %146 = vmatpush1.bf16.msra.mxu0 0
    %147 = vmatprep.subr.bf16.mxu0 0
    %148 = vmatpush1.bf16.msra.mxu0 0
    %149 = vmatprep.subr.bf16.mxu0 0
    %150 = vmatpush1.bf16.msra.mxu0 0
    %151 = vmatprep.mubr.bf16.mxu0 0
    %152 = vmatmul.mubr.bf16.gmra.mrb[0].mxu0 %v76
    %v153 = vpop.f32.mrb[0].mxu0
    %v154 = vadd.f32 0.0, %v153
    %v155 = vpop.f32.mrb[0].mxu0
    %v156 = vadd.f32 0.0, %v155
    %v157 = vpop.f32.mrb[0].mxu0
    %v158 = vpop.f32.mrb[0].mxu0
    %159 = vdwg.mxu0
    %v160 = vmul.f32 %v113, 0.2
    %v161 = vmul.f32 %v115, 0.2
    %v162 = vmul.f32 %v154, 0.2
    %v163 = vmul.f32 %v156, 0.2
    %v164 = vmax.f32 %v113, %v160
    %v165 = vmax.f32 %v115, %v161
    %v166 = vmax.f32 %v154, %v162
    %v167 = vmax.f32 %v156, %v163
    %v168 = vpack.c.bf16 %v164, %v164
    %v169 = vpack.c.bf16 %v165, %v165
    %v170 = vpack.c.bf16 %v166, %v166
    %v171 = vpack.c.bf16 %v167, %v167
    %v172 = vld [vmem:[#allocation2] sm:$0xff]
    %v173 = vld [vmem:[#allocation2 + $0x8] sm:$0xff]
    %v174 = vld [vmem:[#allocation2 + $0x10] sm:$0xff]
    %v175 = vld [vmem:[#allocation2 + $0x18] sm:$0xff]
    %v176 = vld [vmem:[#allocation2 + $0x20] sm:$0xff]
    %v177 = vld [vmem:[#allocation2 + $0x28] sm:$0xff]
    %v178 = vld [vmem:[#allocation2 + $0x30] sm:$0xff]
    %v179 = vld [vmem:[#allocation2 + $0x38] sm:$0xff]
    %v180 = vld [vmem:[#allocation2 + $0x40] sm:$0xff]
    %v181 = vld [vmem:[#allocation2 + $0x48] sm:$0xff]
    %v182 = vld [vmem:[#allocation2 + $0x50] sm:$0xff]
    %v183 = vld [vmem:[#allocation2 + $0x58] sm:$0xff]
    %v184 = vld [vmem:[#allocation2 + $0x60] sm:$0xff]
    %v185 = vld [vmem:[#allocation2 + $0x68] sm:$0xff]
    %v186 = vld [vmem:[#allocation2 + $0x70] sm:$0xff]
    %v187 = vld [vmem:[#allocation2 + $0x78] sm:$0xff]
    %v188 = vld [vmem:[#allocation2 + $0x80] sm:$0xff]
    %v189 = vld [vmem:[#allocation2 + $0x88] sm:$0xff]
    %v190 = vld [vmem:[#allocation2 + $0x90] sm:$0xff]
    %v191 = vld [vmem:[#allocation2 + $0x98] sm:$0xff]
    %v192 = vld [vmem:[#allocation2 + $0xa0] sm:$0xff]
    %v193 = vld [vmem:[#allocation2 + $0xa8] sm:$0xff]
    %v194 = vld [vmem:[#allocation2 + $0xb0] sm:$0xff]
    %v195 = vld [vmem:[#allocation2 + $0xb8] sm:$0xff]
    %v196 = vld [vmem:[#allocation2 + $0xc0] sm:$0xff]
    %v197 = vld [vmem:[#allocation2 + $0xc8] sm:$0xff]
    %v198 = vld [vmem:[#allocation2 + $0xd0] sm:$0xff]
    %v199 = vld [vmem:[#allocation2 + $0xd8] sm:$0xff]
    %v200 = vld [vmem:[#allocation2 + $0xe0] sm:$0xff]
    %v201 = vld [vmem:[#allocation2 + $0xe8] sm:$0xff]
    %v202 = vld [vmem:[#allocation2 + $0xf0] sm:$0xff]
    %v203 = vld [vmem:[#allocation2 + $0xf8] sm:$0xff]
    %v204 = vld [vmem:[#allocation2 + $0x100] sm:$0xff]
    %v205 = vld [vmem:[#allocation2 + $0x108] sm:$0xff]
    %v206 = vld [vmem:[#allocation2 + $0x110] sm:$0xff]
    %v207 = vld [vmem:[#allocation2 + $0x118] sm:$0xff]
    %v208 = vld [vmem:[#allocation2 + $0x120] sm:$0xff]
    %v209 = vld [vmem:[#allocation2 + $0x128] sm:$0xff]
    %v210 = vld [vmem:[#allocation2 + $0x130] sm:$0xff]
    %v211 = vld [vmem:[#allocation2 + $0x138] sm:$0xff]
    %v212 = vld [vmem:[#allocation2 + $0x140] sm:$0xff]
    %v213 = vld [vmem:[#allocation2 + $0x148] sm:$0xff]
    %v214 = vld [vmem:[#allocation2 + $0x150] sm:$0xff]
    %v215 = vld [vmem:[#allocation2 + $0x158] sm:$0xff]
    %v216 = vld [vmem:[#allocation2 + $0x160] sm:$0xff]
    %v217 = vld [vmem:[#allocation2 + $0x168] sm:$0xff]
    %v218 = vld [vmem:[#allocation2 + $0x170] sm:$0xff]
    %v219 = vld [vmem:[#allocation2 + $0x178] sm:$0xff]
    %v220 = vld [vmem:[#allocation2 + $0x180] sm:$0xff]
    %v221 = vld [vmem:[#allocation2 + $0x188] sm:$0xff]
    %v222 = vld [vmem:[#allocation2 + $0x190] sm:$0xff]
    %v223 = vld [vmem:[#allocation2 + $0x198] sm:$0xff]
    %v224 = vld [vmem:[#allocation2 + $0x1a0] sm:$0xff]
    %v225 = vld [vmem:[#allocation2 + $0x1a8] sm:$0xff]
    %v226 = vld [vmem:[#allocation2 + $0x1b0] sm:$0xff]
    %v227 = vld [vmem:[#allocation2 + $0x1b8] sm:$0xff]
    %v228 = vld [vmem:[#allocation2 + $0x1c0] sm:$0xff]
    %v229 = vld [vmem:[#allocation2 + $0x1c8] sm:$0xff]
    %v230 = vld [vmem:[#allocation2 + $0x1d0] sm:$0xff]
    %v231 = vld [vmem:[#allocation2 + $0x1d8] sm:$0xff]
    %v232 = vld [vmem:[#allocation2 + $0x1e0] sm:$0xff]
    %v233 = vld [vmem:[#allocation2 + $0x1e8] sm:$0xff]
    %v234 = vld [vmem:[#allocation2 + $0x1f0] sm:$0xff]
    %v235 = vld [vmem:[#allocation2 + $0x1f8] sm:$0xff]
    %v236 = vld [vmem:[#allocation2 + $0x200] sm:$0xff]
    %v237 = vld [vmem:[#allocation2 + $0x208] sm:$0xff]
    %v238 = vld [vmem:[#allocation2 + $0x210] sm:$0xff]
    %v239 = vld [vmem:[#allocation2 + $0x218] sm:$0xff]
    %v240 = vld [vmem:[#allocation2 + $0x220] sm:$0xff]
    %v241 = vld [vmem:[#allocation2 + $0x228] sm:$0xff]
    %v242 = vld [vmem:[#allocation2 + $0x230] sm:$0xff]
    %v243 = vld [vmem:[#allocation2 + $0x238] sm:$0xff]
    %v244 = vld [vmem:[#allocation2 + $0x240] sm:$0xff]
    %v245 = vld [vmem:[#allocation2 + $0x248] sm:$0xff]
    %v246 = vld [vmem:[#allocation2 + $0x250] sm:$0xff]
    %v247 = vld [vmem:[#allocation2 + $0x258] sm:$0xff]
    %v248 = vld [vmem:[#allocation2 + $0x260] sm:$0xff]
    %v249 = vld [vmem:[#allocation2 + $0x268] sm:$0xff]
    %v250 = vld [vmem:[#allocation2 + $0x270] sm:$0xff]
    %v251 = vld [vmem:[#allocation2 + $0x278] sm:$0xff]
    %v252 = vld [vmem:[#allocation2 + $0x280] sm:$0xff]
    %v253 = vld [vmem:[#allocation2 + $0x288] sm:$0xff]
    %v254 = vld [vmem:[#allocation2 + $0x290] sm:$0xff]
    %v255 = vld [vmem:[#allocation2 + $0x298] sm:$0xff]
    %v256 = vld [vmem:[#allocation2 + $0x2a0] sm:$0xff]
    %v257 = vld [vmem:[#allocation2 + $0x2a8] sm:$0xff]
    %v258 = vld [vmem:[#allocation2 + $0x2b0] sm:$0xff]
    %v259 = vld [vmem:[#allocation2 + $0x2b8] sm:$0xff]
    %v260 = vld [vmem:[#allocation2 + $0x2c0] sm:$0xff]
    %v261 = vld [vmem:[#allocation2 + $0x2c8] sm:$0xff]
    %v262 = vld [vmem:[#allocation2 + $0x2d0] sm:$0xff]
    %v263 = vld [vmem:[#allocation2 + $0x2d8] sm:$0xff]
    %v264 = vld [vmem:[#allocation2 + $0x2e0] sm:$0xff]
    %v265 = vld [vmem:[#allocation2 + $0x2e8] sm:$0xff]
    %v266 = vld [vmem:[#allocation2 + $0x2f0] sm:$0xff]
    %v267 = vld [vmem:[#allocation2 + $0x2f8] sm:$0xff]
    %v268 = vld [vmem:[#allocation2 + $0x300] sm:$0xff]
    %v269 = vld [vmem:[#allocation2 + $0x308] sm:$0xff]
    %v270 = vld [vmem:[#allocation2 + $0x310] sm:$0xff]
    %v271 = vld [vmem:[#allocation2 + $0x318] sm:$0xff]
    %v272 = vld [vmem:[#allocation2 + $0x320] sm:$0xff]
    %v273 = vld [vmem:[#allocation2 + $0x328] sm:$0xff]
    %v274 = vld [vmem:[#allocation2 + $0x330] sm:$0xff]
    %v275 = vld [vmem:[#allocation2 + $0x338] sm:$0xff]
    %v276 = vld [vmem:[#allocation2 + $0x340] sm:$0xff]
    %v277 = vld [vmem:[#allocation2 + $0x348] sm:$0xff]
    %v278 = vld [vmem:[#allocation2 + $0x350] sm:$0xff]
    %v279 = vld [vmem:[#allocation2 + $0x358] sm:$0xff]
    %v280 = vld [vmem:[#allocation2 + $0x360] sm:$0xff]
    %v281 = vld [vmem:[#allocation2 + $0x368] sm:$0xff]
    %v282 = vld [vmem:[#allocation2 + $0x370] sm:$0xff]
    %v283 = vld [vmem:[#allocation2 + $0x378] sm:$0xff]
    %v284 = vld [vmem:[#allocation2 + $0x380] sm:$0xff]
    %v285 = vld [vmem:[#allocation2 + $0x388] sm:$0xff]
    %v286 = vld [vmem:[#allocation2 + $0x390] sm:$0xff]
    %v287 = vld [vmem:[#allocation2 + $0x398] sm:$0xff]
    %v288 = vld [vmem:[#allocation2 + $0x3a0] sm:$0xff]
    %v289 = vld [vmem:[#allocation2 + $0x3a8] sm:$0xff]
    %v290 = vld [vmem:[#allocation2 + $0x3b0] sm:$0xff]
    %v291 = vld [vmem:[#allocation2 + $0x3b8] sm:$0xff]
    %v292 = vld [vmem:[#allocation2 + $0x3c0] sm:$0xff]
    %v293 = vld [vmem:[#allocation2 + $0x3c8] sm:$0xff]
    %v294 = vld [vmem:[#allocation2 + $0x3d0] sm:$0xff]
    %v295 = vld [vmem:[#allocation2 + $0x3d8] sm:$0xff]
    %v296 = vld [vmem:[#allocation2 + $0x3e0] sm:$0xff]
    %v297 = vld [vmem:[#allocation2 + $0x3e8] sm:$0xff]
    %v298 = vld [vmem:[#allocation2 + $0x3f0] sm:$0xff]
    %v299 = vld [vmem:[#allocation2 + $0x3f8] sm:$0xff]
    %v300 = vld [vmem:[%s5] ss:$4 sm:$0xf]
    %v302 = vlaneseq
    %v303 = vshrl.u32 %v302, 7
    %v304 = vsub.s32 0, %v303
    %v305 = vrot.slane %v300, %v304
    %v306 = vlaneseq
    %v307 = vshrl.u32 %v306, 7
    %v308 = vsub.s32 1, %v307
    %v309 = vrot.slane %v300, %v308
    %v310 = vlaneseq
    %v311 = vshrl.u32 %v310, 7
    %v312 = vsub.s32 2, %v311
    %v313 = vrot.slane %v300, %v312
    %v314 = vlaneseq
    %v315 = vshrl.u32 %v314, 7
    %v316 = vsub.s32 3, %v315
    %v317 = vrot.slane %v300, %v316
    %v450 = vunpack.c.l.b16 %v172
    %v451 = vunpack.c.h.b16 %v172
    %v452 = vunpack.c.l.b16 %v173
    %v453 = vunpack.c.h.b16 %v173
    %v454 = vunpack.c.l.b16 %v174
    %v455 = vunpack.c.h.b16 %v174
    %v456 = vunpack.c.l.b16 %v175
    %v457 = vunpack.c.h.b16 %v175
    %v458 = vunpack.c.l.b16 %v176
    %v459 = vunpack.c.h.b16 %v176
    %v460 = vunpack.c.l.b16 %v177
    %v461 = vunpack.c.h.b16 %v177
    %v462 = vunpack.c.l.b16 %v178
    %v463 = vunpack.c.h.b16 %v178
    %v464 = vunpack.c.l.b16 %v179
    %v465 = vunpack.c.h.b16 %v179
    %v466 = vunpack.c.l.b16 %v180
    %v467 = vunpack.c.h.b16 %v180
    %v468 = vunpack.c.l.b16 %v181
    %v469 = vunpack.c.h.b16 %v181
    %v470 = vunpack.c.l.b16 %v182
    %v471 = vunpack.c.h.b16 %v182
    %v472 = vunpack.c.l.b16 %v183
    %v473 = vunpack.c.h.b16 %v183
    %v474 = vunpack.c.l.b16 %v184
    %v475 = vunpack.c.h.b16 %v184
    %v476 = vunpack.c.l.b16 %v185
    %v477 = vunpack.c.h.b16 %v185
    %v478 = vunpack.c.l.b16 %v186
    %v479 = vunpack.c.h.b16 %v186
    %v480 = vunpack.c.l.b16 %v187
    %v481 = vunpack.c.h.b16 %v187
    %v482 = vunpack.c.l.b16 %v188
    %v483 = vunpack.c.h.b16 %v188
    %v484 = vunpack.c.l.b16 %v189
    %v485 = vunpack.c.h.b16 %v189
    %v486 = vunpack.c.l.b16 %v190
    %v487 = vunpack.c.h.b16 %v190
    %v488 = vunpack.c.l.b16 %v191
    %v489 = vunpack.c.h.b16 %v191
    %v490 = vunpack.c.l.b16 %v192
    %v491 = vunpack.c.h.b16 %v192
    %v492 = vunpack.c.l.b16 %v193
    %v493 = vunpack.c.h.b16 %v193
    %v494 = vunpack.c.l.b16 %v194
    %v495 = vunpack.c.h.b16 %v194
    %v496 = vunpack.c.l.b16 %v195
    %v497 = vunpack.c.h.b16 %v195
    %v498 = vunpack.c.l.b16 %v196
    %v499 = vunpack.c.h.b16 %v196
    %v500 = vunpack.c.l.b16 %v197
    %v501 = vunpack.c.h.b16 %v197
    %v502 = vunpack.c.l.b16 %v198
    %v503 = vunpack.c.h.b16 %v198
    %v504 = vunpack.c.l.b16 %v199
    %v505 = vunpack.c.h.b16 %v199
    %v506 = vunpack.c.l.b16 %v200
    %v507 = vunpack.c.h.b16 %v200
    %v508 = vunpack.c.l.b16 %v201
    %v509 = vunpack.c.h.b16 %v201
    %v510 = vunpack.c.l.b16 %v202
    %v511 = vunpack.c.h.b16 %v202
    %v512 = vunpack.c.l.b16 %v203
    %v513 = vunpack.c.h.b16 %v203
    %v514 = vunpack.c.l.b16 %v204
    %v515 = vunpack.c.h.b16 %v204
    %v516 = vunpack.c.l.b16 %v205
    %v517 = vunpack.c.h.b16 %v205
    %v518 = vunpack.c.l.b16 %v206
    %v519 = vunpack.c.h.b16 %v206
    %v520 = vunpack.c.l.b16 %v207
    %v521 = vunpack.c.h.b16 %v207
    %v522 = vunpack.c.l.b16 %v208
    %v523 = vunpack.c.h.b16 %v208
    %v524 = vunpack.c.l.b16 %v209
    %v525 = vunpack.c.h.b16 %v209
    %v526 = vunpack.c.l.b16 %v210
    %v527 = vunpack.c.h.b16 %v210
    %v528 = vunpack.c.l.b16 %v211
    %v529 = vunpack.c.h.b16 %v211
    %v530 = vunpack.c.l.b16 %v212
    %v531 = vunpack.c.h.b16 %v212
    %v532 = vunpack.c.l.b16 %v213
    %v533 = vunpack.c.h.b16 %v213
    %v534 = vunpack.c.l.b16 %v214
    %v535 = vunpack.c.h.b16 %v214
    %v536 = vunpack.c.l.b16 %v215
    %v537 = vunpack.c.h.b16 %v215
    %v538 = vunpack.c.l.b16 %v216
    %v539 = vunpack.c.h.b16 %v216
    %v540 = vunpack.c.l.b16 %v217
    %v541 = vunpack.c.h.b16 %v217
    %v542 = vunpack.c.l.b16 %v218
    %v543 = vunpack.c.h.b16 %v218
    %v544 = vunpack.c.l.b16 %v219
    %v545 = vunpack.c.h.b16 %v219
    %v546 = vunpack.c.l.b16 %v220
    %v547 = vunpack.c.h.b16 %v220
    %v548 = vunpack.c.l.b16 %v221
    %v549 = vunpack.c.h.b16 %v221
    %v550 = vunpack.c.l.b16 %v222
    %v551 = vunpack.c.h.b16 %v222
    %v552 = vunpack.c.l.b16 %v223
    %v553 = vunpack.c.h.b16 %v223
    %v554 = vunpack.c.l.b16 %v224
    %v555 = vunpack.c.h.b16 %v224
    %v556 = vunpack.c.l.b16 %v225
    %v557 = vunpack.c.h.b16 %v225
    %v558 = vunpack.c.l.b16 %v226
    %v559 = vunpack.c.h.b16 %v226
    %v560 = vunpack.c.l.b16 %v227
    %v561 = vunpack.c.h.b16 %v227
    %v562 = vunpack.c.l.b16 %v228
    %v563 = vunpack.c.h.b16 %v228
    %v564 = vunpack.c.l.b16 %v229
    %v565 = vunpack.c.h.b16 %v229
    %v566 = vunpack.c.l.b16 %v230
    %v567 = vunpack.c.h.b16 %v230
    %v568 = vunpack.c.l.b16 %v231
    %v569 = vunpack.c.h.b16 %v231
    %v570 = vunpack.c.l.b16 %v232
    %v571 = vunpack.c.h.b16 %v232
    %v572 = vunpack.c.l.b16 %v233
    %v573 = vunpack.c.h.b16 %v233
    %v574 = vunpack.c.l.b16 %v234
    %v575 = vunpack.c.h.b16 %v234
    %v576 = vunpack.c.l.b16 %v235
    %v577 = vunpack.c.h.b16 %v235
    %v578 = vunpack.c.l.b16 %v236
    %v579 = vunpack.c.h.b16 %v236
    %v580 = vunpack.c.l.b16 %v237
    %v581 = vunpack.c.h.b16 %v237
    %v582 = vunpack.c.l.b16 %v238
    %v583 = vunpack.c.h.b16 %v238
    %v584 = vunpack.c.l.b16 %v239
    %v585 = vunpack.c.h.b16 %v239
    %v586 = vunpack.c.l.b16 %v240
    %v587 = vunpack.c.h.b16 %v240
    %v588 = vunpack.c.l.b16 %v241
    %v589 = vunpack.c.h.b16 %v241
    %v590 = vunpack.c.l.b16 %v242
    %v591 = vunpack.c.h.b16 %v242
    %v592 = vunpack.c.l.b16 %v243
    %v593 = vunpack.c.h.b16 %v243
    %v594 = vunpack.c.l.b16 %v244
    %v595 = vunpack.c.h.b16 %v244
    %v596 = vunpack.c.l.b16 %v245
    %v597 = vunpack.c.h.b16 %v245
    %v598 = vunpack.c.l.b16 %v246
    %v599 = vunpack.c.h.b16 %v246
    %v600 = vunpack.c.l.b16 %v247
    %v601 = vunpack.c.h.b16 %v247
    %v602 = vunpack.c.l.b16 %v248
    %v603 = vunpack.c.h.b16 %v248
    %v604 = vunpack.c.l.b16 %v249
    %v605 = vunpack.c.h.b16 %v249
    %v606 = vunpack.c.l.b16 %v250
    %v607 = vunpack.c.h.b16 %v250
    %v608 = vunpack.c.l.b16 %v251
    %v609 = vunpack.c.h.b16 %v251
    %v610 = vunpack.c.l.b16 %v252
    %v611 = vunpack.c.h.b16 %v252
    %v612 = vunpack.c.l.b16 %v253
    %v613 = vunpack.c.h.b16 %v253
    %v614 = vunpack.c.l.b16 %v254
    %v615 = vunpack.c.h.b16 %v254
    %v616 = vunpack.c.l.b16 %v255
    %v617 = vunpack.c.h.b16 %v255
    %v618 = vunpack.c.l.b16 %v256
    %v619 = vunpack.c.h.b16 %v256
    %v620 = vunpack.c.l.b16 %v257
    %v621 = vunpack.c.h.b16 %v257
    %v622 = vunpack.c.l.b16 %v258
    %v623 = vunpack.c.h.b16 %v258
    %v624 = vunpack.c.l.b16 %v259
    %v625 = vunpack.c.h.b16 %v259
    %v626 = vunpack.c.l.b16 %v260
    %v627 = vunpack.c.h.b16 %v260
    %v628 = vunpack.c.l.b16 %v261
    %v629 = vunpack.c.h.b16 %v261
    %v630 = vunpack.c.l.b16 %v262
    %v631 = vunpack.c.h.b16 %v262
    %v632 = vunpack.c.l.b16 %v263
    %v633 = vunpack.c.h.b16 %v263
    %v634 = vunpack.c.l.b16 %v264
    %v635 = vunpack.c.h.b16 %v264
    %v636 = vunpack.c.l.b16 %v265
    %v637 = vunpack.c.h.b16 %v265
    %v638 = vunpack.c.l.b16 %v266
    %v639 = vunpack.c.h.b16 %v266
    %v640 = vunpack.c.l.b16 %v267
    %v641 = vunpack.c.h.b16 %v267
    %v642 = vunpack.c.l.b16 %v268
    %v643 = vunpack.c.h.b16 %v268
    %v644 = vunpack.c.l.b16 %v269
    %v645 = vunpack.c.h.b16 %v269
    %v646 = vunpack.c.l.b16 %v270
    %v647 = vunpack.c.h.b16 %v270
    %v648 = vunpack.c.l.b16 %v271
    %v649 = vunpack.c.h.b16 %v271
    %v650 = vunpack.c.l.b16 %v272
    %v651 = vunpack.c.h.b16 %v272
    %v652 = vunpack.c.l.b16 %v273
    %v653 = vunpack.c.h.b16 %v273
    %v654 = vunpack.c.l.b16 %v274
    %v655 = vunpack.c.h.b16 %v274
    %v656 = vunpack.c.l.b16 %v275
    %v657 = vunpack.c.h.b16 %v275
    %v658 = vunpack.c.l.b16 %v276
    %v659 = vunpack.c.h.b16 %v276
    %v660 = vunpack.c.l.b16 %v277
    %v661 = vunpack.c.h.b16 %v277
    %v662 = vunpack.c.l.b16 %v278
    %v663 = vunpack.c.h.b16 %v278
    %v664 = vunpack.c.l.b16 %v279
    %v665 = vunpack.c.h.b16 %v279
    %v666 = vunpack.c.l.b16 %v280
    %v667 = vunpack.c.h.b16 %v280
    %v668 = vunpack.c.l.b16 %v281
    %v669 = vunpack.c.h.b16 %v281
    %v670 = vunpack.c.l.b16 %v282
    %v671 = vunpack.c.h.b16 %v282
    %v672 = vunpack.c.l.b16 %v283
    %v673 = vunpack.c.h.b16 %v283
    %v674 = vunpack.c.l.b16 %v284
    %v675 = vunpack.c.h.b16 %v284
    %v676 = vunpack.c.l.b16 %v285
    %v677 = vunpack.c.h.b16 %v285
    %v678 = vunpack.c.l.b16 %v286
    %v679 = vunpack.c.h.b16 %v286
    %v680 = vunpack.c.l.b16 %v287
    %v681 = vunpack.c.h.b16 %v287
    %v682 = vunpack.c.l.b16 %v288
    %v683 = vunpack.c.h.b16 %v288
    %v684 = vunpack.c.l.b16 %v289
    %v685 = vunpack.c.h.b16 %v289
    %v686 = vunpack.c.l.b16 %v290
    %v687 = vunpack.c.h.b16 %v290
    %v688 = vunpack.c.l.b16 %v291
    %v689 = vunpack.c.h.b16 %v291
    %v690 = vunpack.c.l.b16 %v292
    %v691 = vunpack.c.h.b16 %v292
    %v692 = vunpack.c.l.b16 %v293
    %v693 = vunpack.c.h.b16 %v293
    %v694 = vunpack.c.l.b16 %v294
    %v695 = vunpack.c.h.b16 %v294
    %v696 = vunpack.c.l.b16 %v295
    %v697 = vunpack.c.h.b16 %v295
    %v698 = vunpack.c.l.b16 %v296
    %v699 = vunpack.c.h.b16 %v296
    %v700 = vunpack.c.l.b16 %v297
    %v701 = vunpack.c.h.b16 %v297
    %v702 = vunpack.c.l.b16 %v298
    %v703 = vunpack.c.h.b16 %v298
    %v704 = vunpack.c.l.b16 %v299
    %v705 = vunpack.c.h.b16 %v299
    %v706 = vpack.c.b16 %v454, %v450
    %v707 = vpack.c.b16 %v455, %v451
    %v708 = vpack.c.b16 %v456, %v452
    %v709 = vpack.c.b16 %v457, %v453
    %v710 = vpack.c.b16 %v462, %v458
    %v711 = vpack.c.b16 %v463, %v459
    %v712 = vpack.c.b16 %v464, %v460
    %v713 = vpack.c.b16 %v465, %v461
    %v714 = vpack.c.b16 %v470, %v466
    %v715 = vpack.c.b16 %v471, %v467
    %v716 = vpack.c.b16 %v472, %v468
    %v717 = vpack.c.b16 %v473, %v469
    %v718 = vpack.c.b16 %v478, %v474
    %v719 = vpack.c.b16 %v479, %v475
    %v720 = vpack.c.b16 %v480, %v476
    %v721 = vpack.c.b16 %v481, %v477
    %v722 = vpack.c.b16 %v486, %v482
    %v723 = vpack.c.b16 %v487, %v483
    %v724 = vpack.c.b16 %v488, %v484
    %v725 = vpack.c.b16 %v489, %v485
    %v726 = vpack.c.b16 %v494, %v490
    %v727 = vpack.c.b16 %v495, %v491
    %v728 = vpack.c.b16 %v496, %v492
    %v729 = vpack.c.b16 %v497, %v493
    %v730 = vpack.c.b16 %v502, %v498
    %v731 = vpack.c.b16 %v503, %v499
    %v732 = vpack.c.b16 %v504, %v500
    %v733 = vpack.c.b16 %v505, %v501
    %v734 = vpack.c.b16 %v510, %v506
    %v735 = vpack.c.b16 %v511, %v507
    %v736 = vpack.c.b16 %v512, %v508
    %v737 = vpack.c.b16 %v513, %v509
    %v738 = vpack.c.b16 %v518, %v514
    %v739 = vpack.c.b16 %v519, %v515
    %v740 = vpack.c.b16 %v520, %v516
    %v741 = vpack.c.b16 %v521, %v517
    %v742 = vpack.c.b16 %v526, %v522
    %v743 = vpack.c.b16 %v527, %v523
    %v744 = vpack.c.b16 %v528, %v524
    %v745 = vpack.c.b16 %v529, %v525
    %v746 = vpack.c.b16 %v534, %v530
    %v747 = vpack.c.b16 %v535, %v531
    %v748 = vpack.c.b16 %v536, %v532
    %v749 = vpack.c.b16 %v537, %v533
    %v750 = vpack.c.b16 %v542, %v538
    %v751 = vpack.c.b16 %v543, %v539
    %v752 = vpack.c.b16 %v544, %v540
    %v753 = vpack.c.b16 %v545, %v541
    %v754 = vpack.c.b16 %v550, %v546
    %v755 = vpack.c.b16 %v551, %v547
    %v756 = vpack.c.b16 %v552, %v548
    %v757 = vpack.c.b16 %v553, %v549
    %v758 = vpack.c.b16 %v558, %v554
    %v759 = vpack.c.b16 %v559, %v555
    %v760 = vpack.c.b16 %v560, %v556
    %v761 = vpack.c.b16 %v561, %v557
    %v762 = vpack.c.b16 %v566, %v562
    %v763 = vpack.c.b16 %v567, %v563
    %v764 = vpack.c.b16 %v568, %v564
    %v765 = vpack.c.b16 %v569, %v565
    %v766 = vpack.c.b16 %v574, %v570
    %v767 = vpack.c.b16 %v575, %v571
    %v768 = vpack.c.b16 %v576, %v572
    %v769 = vpack.c.b16 %v577, %v573
    %v770 = vpack.c.b16 %v582, %v578
    %v771 = vpack.c.b16 %v583, %v579
    %v772 = vpack.c.b16 %v584, %v580
    %v773 = vpack.c.b16 %v585, %v581
    %v774 = vpack.c.b16 %v590, %v586
    %v775 = vpack.c.b16 %v591, %v587
    %v776 = vpack.c.b16 %v592, %v588
    %v777 = vpack.c.b16 %v593, %v589
    %v778 = vpack.c.b16 %v598, %v594
    %v779 = vpack.c.b16 %v599, %v595
    %v780 = vpack.c.b16 %v600, %v596
    %v781 = vpack.c.b16 %v601, %v597
    %v782 = vpack.c.b16 %v606, %v602
    %v783 = vpack.c.b16 %v607, %v603
    %v784 = vpack.c.b16 %v608, %v604
    %v785 = vpack.c.b16 %v609, %v605
    %v786 = vpack.c.b16 %v614, %v610
    %v787 = vpack.c.b16 %v615, %v611
    %v788 = vpack.c.b16 %v616, %v612
    %v789 = vpack.c.b16 %v617, %v613
    %v790 = vpack.c.b16 %v622, %v618
    %v791 = vpack.c.b16 %v623, %v619
    %v792 = vpack.c.b16 %v624, %v620
    %v793 = vpack.c.b16 %v625, %v621
    %v794 = vpack.c.b16 %v630, %v626
    %v795 = vpack.c.b16 %v631, %v627
    %v796 = vpack.c.b16 %v632, %v628
    %v797 = vpack.c.b16 %v633, %v629
    %v798 = vpack.c.b16 %v638, %v634
    %v799 = vpack.c.b16 %v639, %v635
    %v800 = vpack.c.b16 %v640, %v636
    %v801 = vpack.c.b16 %v641, %v637
    %v802 = vpack.c.b16 %v646, %v642
    %v803 = vpack.c.b16 %v647, %v643
    %v804 = vpack.c.b16 %v648, %v644
    %v805 = vpack.c.b16 %v649, %v645
    %v806 = vpack.c.b16 %v654, %v650
    %v807 = vpack.c.b16 %v655, %v651
    %v808 = vpack.c.b16 %v656, %v652
    %v809 = vpack.c.b16 %v657, %v653
    %v810 = vpack.c.b16 %v662, %v658
    %v811 = vpack.c.b16 %v663, %v659
    %v812 = vpack.c.b16 %v664, %v660
    %v813 = vpack.c.b16 %v665, %v661
    %v814 = vpack.c.b16 %v670, %v666
    %v815 = vpack.c.b16 %v671, %v667
    %v816 = vpack.c.b16 %v672, %v668
    %v817 = vpack.c.b16 %v673, %v669
    %v818 = vpack.c.b16 %v678, %v674
    %v819 = vpack.c.b16 %v679, %v675
    %v820 = vpack.c.b16 %v680, %v676
    %v821 = vpack.c.b16 %v681, %v677
    %v822 = vpack.c.b16 %v686, %v682
    %v823 = vpack.c.b16 %v687, %v683
    %v824 = vpack.c.b16 %v688, %v684
    %v825 = vpack.c.b16 %v689, %v685
    %v826 = vpack.c.b16 %v694, %v690
    %v827 = vpack.c.b16 %v695, %v691
    %v828 = vpack.c.b16 %v696, %v692
    %v829 = vpack.c.b16 %v697, %v693
    %v830 = vpack.c.b16 %v702, %v698
    %v831 = vpack.c.b16 %v703, %v699
    %v832 = vpack.c.b16 %v704, %v700
    %v833 = vpack.c.b16 %v705, %v701
    %962 = vmatprep.subr.bf16.mxu0 %v707
    %963 = vmatpush1.bf16.msra.mxu0 %v706
    %964 = vmatprep.subr.bf16.mxu0 %v711
    %965 = vmatpush1.bf16.msra.mxu0 %v710
    %966 = vmatprep.subr.bf16.mxu0 %v715
    %967 = vmatpush1.bf16.msra.mxu0 %v714
    %968 = vmatprep.subr.bf16.mxu0 %v719
    %969 = vmatpush1.bf16.msra.mxu0 %v718
    %970 = vmatprep.subr.bf16.mxu0 %v723
    %971 = vmatpush1.bf16.msra.mxu0 %v722
    %972 = vmatprep.subr.bf16.mxu0 %v727
    %973 = vmatpush1.bf16.msra.mxu0 %v726
    %974 = vmatprep.subr.bf16.mxu0 %v731
    %975 = vmatpush1.bf16.msra.mxu0 %v730
    %976 = vmatprep.subr.bf16.mxu0 %v735
    %977 = vmatpush1.bf16.msra.mxu0 %v734
    %978 = vmatprep.subr.bf16.mxu0 %v739
    %979 = vmatpush1.bf16.msra.mxu0 %v738
    %980 = vmatprep.subr.bf16.mxu0 %v743
    %981 = vmatpush1.bf16.msra.mxu0 %v742
    %982 = vmatprep.subr.bf16.mxu0 %v747
    %983 = vmatpush1.bf16.msra.mxu0 %v746
    %984 = vmatprep.subr.bf16.mxu0 %v751
    %985 = vmatpush1.bf16.msra.mxu0 %v750
    %986 = vmatprep.subr.bf16.mxu0 %v755
    %987 = vmatpush1.bf16.msra.mxu0 %v754
    %988 = vmatprep.subr.bf16.mxu0 %v759
    %989 = vmatpush1.bf16.msra.mxu0 %v758
    %990 = vmatprep.subr.bf16.mxu0 %v763
    %991 = vmatpush1.bf16.msra.mxu0 %v762
    %992 = vmatprep.subr.bf16.mxu0 %v767
    %993 = vmatpush1.bf16.msra.mxu0 %v766
    %994 = vmatprep.mubr.bf16.mxu0 %v169
    %995 = vmatmul.mubr.bf16.gmra.mrb[0].mxu0 %v168
    %v996 = vpop.f32.mrb[0].mxu0
    %v997 = vadd.f32 %v305, %v996
    %v998 = vpop.f32.mrb[0].mxu0
    %v999 = vadd.f32 %v309, %v998
    %v1000 = vpop.f32.mrb[0].mxu0
    %v1001 = vpop.f32.mrb[0].mxu0
    %1002 = vdwg.mxu0
    %1003 = vmatprep.subr.bf16.mxu0 %v771
    %1004 = vmatpush1.bf16.msra.mxu0 %v770
    %1005 = vmatprep.subr.bf16.mxu0 %v775
    %1006 = vmatpush1.bf16.msra.mxu0 %v774
    %1007 = vmatprep.subr.bf16.mxu0 %v779
    %1008 = vmatpush1.bf16.msra.mxu0 %v778
    %1009 = vmatprep.subr.bf16.mxu0 %v783
    %1010 = vmatpush1.bf16.msra.mxu0 %v782
    %1011 = vmatprep.subr.bf16.mxu0 %v787
    %1012 = vmatpush1.bf16.msra.mxu0 %v786
    %1013 = vmatprep.subr.bf16.mxu0 %v791
    %1014 = vmatpush1.bf16.msra.mxu0 %v790
    %1015 = vmatprep.subr.bf16.mxu0 %v795
    %1016 = vmatpush1.bf16.msra.mxu0 %v794
    %1017 = vmatprep.subr.bf16.mxu0 %v799
    %1018 = vmatpush1.bf16.msra.mxu0 %v798
    %1019 = vmatprep.subr.bf16.mxu0 %v803
    %1020 = vmatpush1.bf16.msra.mxu0 %v802
    %1021 = vmatprep.subr.bf16.mxu0 %v807
    %1022 = vmatpush1.bf16.msra.mxu0 %v806
    %1023 = vmatprep.subr.bf16.mxu0 %v811
    %1024 = vmatpush1.bf16.msra.mxu0 %v810
    %1025 = vmatprep.subr.bf16.mxu0 %v815
    %1026 = vmatpush1.bf16.msra.mxu0 %v814
    %1027 = vmatprep.subr.bf16.mxu0 %v819
    %1028 = vmatpush1.bf16.msra.mxu0 %v818
    %1029 = vmatprep.subr.bf16.mxu0 %v823
    %1030 = vmatpush1.bf16.msra.mxu0 %v822
    %1031 = vmatprep.subr.bf16.mxu0 %v827
    %1032 = vmatpush1.bf16.msra.mxu0 %v826
    %1033 = vmatprep.subr.bf16.mxu0 %v831
    %1034 = vmatpush1.bf16.msra.mxu0 %v830
    %1035 = vmatprep.mubr.bf16.mxu0 %v171
    %1036 = vmatmul.mubr.bf16.gmra.mrb[0].mxu0 %v170
    %v1037 = vpop.f32.mrb[0].mxu0
    %v1038 = vadd.f32 %v997, %v1037
    %v1039 = vpop.f32.mrb[0].mxu0
    %v1040 = vadd.f32 %v999, %v1039
    %v1041 = vpop.f32.mrb[0].mxu0
    %v1042 = vpop.f32.mrb[0].mxu0
    %1043 = vdwg.mxu0
    %1044 = vmatprep.subr.bf16.mxu0 %v709
    %1045 = vmatpush1.bf16.msra.mxu0 %v708
    %1046 = vmatprep.subr.bf16.mxu0 %v713
    %1047 = vmatpush1.bf16.msra.mxu0 %v712
    %1048 = vmatprep.subr.bf16.mxu0 %v717
    %1049 = vmatpush1.bf16.msra.mxu0 %v716
    %1050 = vmatprep.subr.bf16.mxu0 %v721
    %1051 = vmatpush1.bf16.msra.mxu0 %v720
    %1052 = vmatprep.subr.bf16.mxu0 %v725
    %1053 = vmatpush1.bf16.msra.mxu0 %v724
    %1054 = vmatprep.subr.bf16.mxu0 %v729
    %1055 = vmatpush1.bf16.msra.mxu0 %v728
    %1056 = vmatprep.subr.bf16.mxu0 %v733
    %1057 = vmatpush1.bf16.msra.mxu0 %v732
    %1058 = vmatprep.subr.bf16.mxu0 %v737
    %1059 = vmatpush1.bf16.msra.mxu0 %v736
    %1060 = vmatprep.subr.bf16.mxu0 %v741
    %1061 = vmatpush1.bf16.msra.mxu0 %v740
    %1062 = vmatprep.subr.bf16.mxu0 %v745
    %1063 = vmatpush1.bf16.msra.mxu0 %v744
    %1064 = vmatprep.subr.bf16.mxu0 %v749
    %1065 = vmatpush1.bf16.msra.mxu0 %v748
    %1066 = vmatprep.subr.bf16.mxu0 %v753
    %1067 = vmatpush1.bf16.msra.mxu0 %v752
    %1068 = vmatprep.subr.bf16.mxu0 %v757
    %1069 = vmatpush1.bf16.msra.mxu0 %v756
    %1070 = vmatprep.subr.bf16.mxu0 %v761
    %1071 = vmatpush1.bf16.msra.mxu0 %v760
    %1072 = vmatprep.subr.bf16.mxu0 %v765
    %1073 = vmatpush1.bf16.msra.mxu0 %v764
    %1074 = vmatprep.subr.bf16.mxu0 %v769
    %1075 = vmatpush1.bf16.msra.mxu0 %v768
    %1076 = vmatprep.mubr.bf16.mxu0 %v169
    %1077 = vmatmul.mubr.bf16.gmra.mrb[0].mxu0 %v168
    %v1078 = vpop.f32.mrb[0].mxu0
    %v1079 = vadd.f32 %v313, %v1078
    %v1080 = vpop.f32.mrb[0].mxu0
    %v1081 = vadd.f32 %v317, %v1080
    %v1082 = vpop.f32.mrb[0].mxu0
    %v1083 = vpop.f32.mrb[0].mxu0
    %1084 = vdwg.mxu0
    %1085 = vmatprep.subr.bf16.mxu0 %v773
    %1086 = vmatpush1.bf16.msra.mxu0 %v772
    %1087 = vmatprep.subr.bf16.mxu0 %v777
    %1088 = vmatpush1.bf16.msra.mxu0 %v776
    %1089 = vmatprep.subr.bf16.mxu0 %v781
    %1090 = vmatpush1.bf16.msra.mxu0 %v780
    %1091 = vmatprep.subr.bf16.mxu0 %v785
    %1092 = vmatpush1.bf16.msra.mxu0 %v784
    %1093 = vmatprep.subr.bf16.mxu0 %v789
    %1094 = vmatpush1.bf16.msra.mxu0 %v788
    %1095 = vmatprep.subr.bf16.mxu0 %v793
    %1096 = vmatpush1.bf16.msra.mxu0 %v792
    %1097 = vmatprep.subr.bf16.mxu0 %v797
    %1098 = vmatpush1.bf16.msra.mxu0 %v796
    %1099 = vmatprep.subr.bf16.mxu0 %v801
    %1100 = vmatpush1.bf16.msra.mxu0 %v800
    %1101 = vmatprep.subr.bf16.mxu0 %v805
    %1102 = vmatpush1.bf16.msra.mxu0 %v804
    %1103 = vmatprep.subr.bf16.mxu0 %v809
    %1104 = vmatpush1.bf16.msra.mxu0 %v808
    %1105 = vmatprep.subr.bf16.mxu0 %v813
    %1106 = vmatpush1.bf16.msra.mxu0 %v812
    %1107 = vmatprep.subr.bf16.mxu0 %v817
    %1108 = vmatpush1.bf16.msra.mxu0 %v816
    %1109 = vmatprep.subr.bf16.mxu0 %v821
    %1110 = vmatpush1.bf16.msra.mxu0 %v820
    %1111 = vmatprep.subr.bf16.mxu0 %v825
    %1112 = vmatpush1.bf16.msra.mxu0 %v824
    %1113 = vmatprep.subr.bf16.mxu0 %v829
    %1114 = vmatpush1.bf16.msra.mxu0 %v828
    %1115 = vmatprep.subr.bf16.mxu0 %v833
    %1116 = vmatpush1.bf16.msra.mxu0 %v832
    %1117 = vmatprep.mubr.bf16.mxu0 %v171
    %1118 = vmatmul.mubr.bf16.gmra.mrb[0].mxu0 %v170
    %v1119 = vpop.f32.mrb[0].mxu0
    %v1120 = vadd.f32 %v1079, %v1119
    %v1121 = vpop.f32.mrb[0].mxu0
    %v1122 = vadd.f32 %v1081, %v1121
    %v1123 = vpop.f32.mrb[0].mxu0
    %v1124 = vpop.f32.mrb[0].mxu0
    %1125 = vdwg.mxu0
    %v1126 = vmul.f32 %v1038, 0.2
    %v1127 = vmul.f32 %v1040, 0.2
    %v1128 = vmul.f32 %v1120, 0.2
    %v1129 = vmul.f32 %v1122, 0.2
    %v1130 = vmax.f32 %v1038, %v1126
    %v1131 = vmax.f32 %v1040, %v1127
    %v1132 = vmax.f32 %v1120, %v1128
    %v1133 = vmax.f32 %v1122, %v1129
    %v1134 = vpack.c.bf16 %v1130, %v1130
    %v1135 = vpack.c.bf16 %v1131, %v1131
    %v1136 = vpack.c.bf16 %v1132, %v1132
    %v1137 = vpack.c.bf16 %v1133, %v1133
    %s1138 = scalar_lea.vmem [#allocation2], 1024
    %v1139 = vld [vmem:[%s1138] sm:$0xff]
    %v1140 = vld [vmem:[%s1138 + $0x8] sm:$0xff]
    %v1141 = vld [vmem:[%s1138 + $0x10] sm:$0xff]
    %v1142 = vld [vmem:[%s1138 + $0x18] sm:$0xff]
    %v1143 = vld [vmem:[%s1138 + $0x20] sm:$0xff]
    %v1144 = vld [vmem:[%s1138 + $0x28] sm:$0xff]
    %v1145 = vld [vmem:[%s1138 + $0x30] sm:$0xff]
    %v1146 = vld [vmem:[%s1138 + $0x38] sm:$0xff]
    %v1147 = vld [vmem:[%s1138 + $0x40] sm:$0xff]
    %v1148 = vld [vmem:[%s1138 + $0x48] sm:$0xff]
    %v1149 = vld [vmem:[%s1138 + $0x50] sm:$0xff]
    %v1150 = vld [vmem:[%s1138 + $0x58] sm:$0xff]
    %v1151 = vld [vmem:[%s1138 + $0x60] sm:$0xff]
    %v1152 = vld [vmem:[%s1138 + $0x68] sm:$0xff]
    %v1153 = vld [vmem:[%s1138 + $0x70] sm:$0xff]
    %v1154 = vld [vmem:[%s1138 + $0x78] sm:$0xff]
    %v1155 = vld [vmem:[%s1138 + $0x80] sm:$0xff]
    %v1156 = vld [vmem:[%s1138 + $0x88] sm:$0xff]
    %v1157 = vld [vmem:[%s1138 + $0x90] sm:$0xff]
    %v1158 = vld [vmem:[%s1138 + $0x98] sm:$0xff]
    %v1159 = vld [vmem:[%s1138 + $0xa0] sm:$0xff]
    %v1160 = vld [vmem:[%s1138 + $0xa8] sm:$0xff]
    %v1161 = vld [vmem:[%s1138 + $0xb0] sm:$0xff]
    %v1162 = vld [vmem:[%s1138 + $0xb8] sm:$0xff]
    %v1163 = vld [vmem:[%s1138 + $0xc0] sm:$0xff]
    %v1164 = vld [vmem:[%s1138 + $0xc8] sm:$0xff]
    %v1165 = vld [vmem:[%s1138 + $0xd0] sm:$0xff]
    %v1166 = vld [vmem:[%s1138 + $0xd8] sm:$0xff]
    %v1167 = vld [vmem:[%s1138 + $0xe0] sm:$0xff]
    %v1168 = vld [vmem:[%s1138 + $0xe8] sm:$0xff]
    %v1169 = vld [vmem:[%s1138 + $0xf0] sm:$0xff]
    %v1170 = vld [vmem:[%s1138 + $0xf8] sm:$0xff]
    %v1171 = vld [vmem:[%s1138 + $0x100] sm:$0xff]
    %v1172 = vld [vmem:[%s1138 + $0x108] sm:$0xff]
    %v1173 = vld [vmem:[%s1138 + $0x110] sm:$0xff]
    %v1174 = vld [vmem:[%s1138 + $0x118] sm:$0xff]
    %v1175 = vld [vmem:[%s1138 + $0x120] sm:$0xff]
    %v1176 = vld [vmem:[%s1138 + $0x128] sm:$0xff]
    %v1177 = vld [vmem:[%s1138 + $0x130] sm:$0xff]
    %v1178 = vld [vmem:[%s1138 + $0x138] sm:$0xff]
    %v1179 = vld [vmem:[%s1138 + $0x140] sm:$0xff]
    %v1180 = vld [vmem:[%s1138 + $0x148] sm:$0xff]
    %v1181 = vld [vmem:[%s1138 + $0x150] sm:$0xff]
    %v1182 = vld [vmem:[%s1138 + $0x158] sm:$0xff]
    %v1183 = vld [vmem:[%s1138 + $0x160] sm:$0xff]
    %v1184 = vld [vmem:[%s1138 + $0x168] sm:$0xff]
    %v1185 = vld [vmem:[%s1138 + $0x170] sm:$0xff]
    %v1186 = vld [vmem:[%s1138 + $0x178] sm:$0xff]
    %v1187 = vld [vmem:[%s1138 + $0x180] sm:$0xff]
    %v1188 = vld [vmem:[%s1138 + $0x188] sm:$0xff]
    %v1189 = vld [vmem:[%s1138 + $0x190] sm:$0xff]
    %v1190 = vld [vmem:[%s1138 + $0x198] sm:$0xff]
    %v1191 = vld [vmem:[%s1138 + $0x1a0] sm:$0xff]
    %v1192 = vld [vmem:[%s1138 + $0x1a8] sm:$0xff]
    %v1193 = vld [vmem:[%s1138 + $0x1b0] sm:$0xff]
    %v1194 = vld [vmem:[%s1138 + $0x1b8] sm:$0xff]
    %v1195 = vld [vmem:[%s1138 + $0x1c0] sm:$0xff]
    %v1196 = vld [vmem:[%s1138 + $0x1c8] sm:$0xff]
    %v1197 = vld [vmem:[%s1138 + $0x1d0] sm:$0xff]
    %v1198 = vld [vmem:[%s1138 + $0x1d8] sm:$0xff]
    %v1199 = vld [vmem:[%s1138 + $0x1e0] sm:$0xff]
    %v1200 = vld [vmem:[%s1138 + $0x1e8] sm:$0xff]
    %v1201 = vld [vmem:[%s1138 + $0x1f0] sm:$0xff]
    %v1202 = vld [vmem:[%s1138 + $0x1f8] sm:$0xff]
    %v1203 = vld [vmem:[%s1138 + $0x200] sm:$0xff]
    %v1204 = vld [vmem:[%s1138 + $0x208] sm:$0xff]
    %v1205 = vld [vmem:[%s1138 + $0x210] sm:$0xff]
    %v1206 = vld [vmem:[%s1138 + $0x218] sm:$0xff]
    %v1207 = vld [vmem:[%s1138 + $0x220] sm:$0xff]
    %v1208 = vld [vmem:[%s1138 + $0x228] sm:$0xff]
    %v1209 = vld [vmem:[%s1138 + $0x230] sm:$0xff]
    %v1210 = vld [vmem:[%s1138 + $0x238] sm:$0xff]
    %v1211 = vld [vmem:[%s1138 + $0x240] sm:$0xff]
    %v1212 = vld [vmem:[%s1138 + $0x248] sm:$0xff]
    %v1213 = vld [vmem:[%s1138 + $0x250] sm:$0xff]
    %v1214 = vld [vmem:[%s1138 + $0x258] sm:$0xff]
    %v1215 = vld [vmem:[%s1138 + $0x260] sm:$0xff]
    %v1216 = vld [vmem:[%s1138 + $0x268] sm:$0xff]
    %v1217 = vld [vmem:[%s1138 + $0x270] sm:$0xff]
    %v1218 = vld [vmem:[%s1138 + $0x278] sm:$0xff]
    %v1219 = vld [vmem:[%s1138 + $0x280] sm:$0xff]
    %v1220 = vld [vmem:[%s1138 + $0x288] sm:$0xff]
    %v1221 = vld [vmem:[%s1138 + $0x290] sm:$0xff]
    %v1222 = vld [vmem:[%s1138 + $0x298] sm:$0xff]
    %v1223 = vld [vmem:[%s1138 + $0x2a0] sm:$0xff]
    %v1224 = vld [vmem:[%s1138 + $0x2a8] sm:$0xff]
    %v1225 = vld [vmem:[%s1138 + $0x2b0] sm:$0xff]
    %v1226 = vld [vmem:[%s1138 + $0x2b8] sm:$0xff]
    %v1227 = vld [vmem:[%s1138 + $0x2c0] sm:$0xff]
    %v1228 = vld [vmem:[%s1138 + $0x2c8] sm:$0xff]
    %v1229 = vld [vmem:[%s1138 + $0x2d0] sm:$0xff]
    %v1230 = vld [vmem:[%s1138 + $0x2d8] sm:$0xff]
    %v1231 = vld [vmem:[%s1138 + $0x2e0] sm:$0xff]
    %v1232 = vld [vmem:[%s1138 + $0x2e8] sm:$0xff]
    %v1233 = vld [vmem:[%s1138 + $0x2f0] sm:$0xff]
    %v1234 = vld [vmem:[%s1138 + $0x2f8] sm:$0xff]
    %v1235 = vld [vmem:[%s1138 + $0x300] sm:$0xff]
    %v1236 = vld [vmem:[%s1138 + $0x308] sm:$0xff]
    %v1237 = vld [vmem:[%s1138 + $0x310] sm:$0xff]
    %v1238 = vld [vmem:[%s1138 + $0x318] sm:$0xff]
    %v1239 = vld [vmem:[%s1138 + $0x320] sm:$0xff]
    %v1240 = vld [vmem:[%s1138 + $0x328] sm:$0xff]
    %v1241 = vld [vmem:[%s1138 + $0x330] sm:$0xff]
    %v1242 = vld [vmem:[%s1138 + $0x338] sm:$0xff]
    %v1243 = vld [vmem:[%s1138 + $0x340] sm:$0xff]
    %v1244 = vld [vmem:[%s1138 + $0x348] sm:$0xff]
    %v1245 = vld [vmem:[%s1138 + $0x350] sm:$0xff]
    %v1246 = vld [vmem:[%s1138 + $0x358] sm:$0xff]
    %v1247 = vld [vmem:[%s1138 + $0x360] sm:$0xff]
    %v1248 = vld [vmem:[%s1138 + $0x368] sm:$0xff]
    %v1249 = vld [vmem:[%s1138 + $0x370] sm:$0xff]
    %v1250 = vld [vmem:[%s1138 + $0x378] sm:$0xff]
    %v1251 = vld [vmem:[%s1138 + $0x380] sm:$0xff]
    %v1252 = vld [vmem:[%s1138 + $0x388] sm:$0xff]
    %v1253 = vld [vmem:[%s1138 + $0x390] sm:$0xff]
    %v1254 = vld [vmem:[%s1138 + $0x398] sm:$0xff]
    %v1255 = vld [vmem:[%s1138 + $0x3a0] sm:$0xff]
    %v1256 = vld [vmem:[%s1138 + $0x3a8] sm:$0xff]
    %v1257 = vld [vmem:[%s1138 + $0x3b0] sm:$0xff]
    %v1258 = vld [vmem:[%s1138 + $0x3b8] sm:$0xff]
    %v1259 = vld [vmem:[%s1138 + $0x3c0] sm:$0xff]
    %v1260 = vld [vmem:[%s1138 + $0x3c8] sm:$0xff]
    %v1261 = vld [vmem:[%s1138 + $0x3d0] sm:$0xff]
    %v1262 = vld [vmem:[%s1138 + $0x3d8] sm:$0xff]
    %v1263 = vld [vmem:[%s1138 + $0x3e0] sm:$0xff]
    %v1264 = vld [vmem:[%s1138 + $0x3e8] sm:$0xff]
    %v1265 = vld [vmem:[%s1138 + $0x3f0] sm:$0xff]
    %v1266 = vld [vmem:[%s1138 + $0x3f8] sm:$0xff]
    %s1267 = scalar_lea.vmem %s5, 1
    %v1268 = vld [vmem:[%s1267] ss:$4 sm:$0xf]
    %v1270 = vlaneseq
    %v1271 = vshrl.u32 %v1270, 7
    %v1272 = vsub.s32 0, %v1271
    %v1273 = vrot.slane %v1268, %v1272
    %v1274 = vlaneseq
    %v1275 = vshrl.u32 %v1274, 7
    %v1276 = vsub.s32 1, %v1275
    %v1277 = vrot.slane %v1268, %v1276
    %v1278 = vlaneseq
    %v1279 = vshrl.u32 %v1278, 7
    %v1280 = vsub.s32 2, %v1279
    %v1281 = vrot.slane %v1268, %v1280
    %v1282 = vlaneseq
    %v1283 = vshrl.u32 %v1282, 7
    %v1284 = vsub.s32 3, %v1283
    %v1285 = vrot.slane %v1268, %v1284
    %v1418 = vunpack.c.l.b16 %v1139
    %v1419 = vunpack.c.h.b16 %v1139
    %v1420 = vunpack.c.l.b16 %v1140
    %v1421 = vunpack.c.h.b16 %v1140
    %v1422 = vunpack.c.l.b16 %v1141
    %v1423 = vunpack.c.h.b16 %v1141
    %v1424 = vunpack.c.l.b16 %v1142
    %v1425 = vunpack.c.h.b16 %v1142
    %v1426 = vunpack.c.l.b16 %v1143
    %v1427 = vunpack.c.h.b16 %v1143
    %v1428 = vunpack.c.l.b16 %v1144
    %v1429 = vunpack.c.h.b16 %v1144
    %v1430 = vunpack.c.l.b16 %v1145
    %v1431 = vunpack.c.h.b16 %v1145
    %v1432 = vunpack.c.l.b16 %v1146
    %v1433 = vunpack.c.h.b16 %v1146
    %v1434 = vunpack.c.l.b16 %v1147
    %v1435 = vunpack.c.h.b16 %v1147
    %v1436 = vunpack.c.l.b16 %v1148
    %v1437 = vunpack.c.h.b16 %v1148
    %v1438 = vunpack.c.l.b16 %v1149
    %v1439 = vunpack.c.h.b16 %v1149
    %v1440 = vunpack.c.l.b16 %v1150
    %v1441 = vunpack.c.h.b16 %v1150
    %v1442 = vunpack.c.l.b16 %v1151
    %v1443 = vunpack.c.h.b16 %v1151
    %v1444 = vunpack.c.l.b16 %v1152
    %v1445 = vunpack.c.h.b16 %v1152
    %v1446 = vunpack.c.l.b16 %v1153
    %v1447 = vunpack.c.h.b16 %v1153
    %v1448 = vunpack.c.l.b16 %v1154
    %v1449 = vunpack.c.h.b16 %v1154
    %v1450 = vunpack.c.l.b16 %v1155
    %v1451 = vunpack.c.h.b16 %v1155
    %v1452 = vunpack.c.l.b16 %v1156
    %v1453 = vunpack.c.h.b16 %v1156
    %v1454 = vunpack.c.l.b16 %v1157
    %v1455 = vunpack.c.h.b16 %v1157
    %v1456 = vunpack.c.l.b16 %v1158
    %v1457 = vunpack.c.h.b16 %v1158
    %v1458 = vunpack.c.l.b16 %v1159
    %v1459 = vunpack.c.h.b16 %v1159
    %v1460 = vunpack.c.l.b16 %v1160
    %v1461 = vunpack.c.h.b16 %v1160
    %v1462 = vunpack.c.l.b16 %v1161
    %v1463 = vunpack.c.h.b16 %v1161
    %v1464 = vunpack.c.l.b16 %v1162
    %v1465 = vunpack.c.h.b16 %v1162
    %v1466 = vunpack.c.l.b16 %v1163
    %v1467 = vunpack.c.h.b16 %v1163
    %v1468 = vunpack.c.l.b16 %v1164
    %v1469 = vunpack.c.h.b16 %v1164
    %v1470 = vunpack.c.l.b16 %v1165
    %v1471 = vunpack.c.h.b16 %v1165
    %v1472 = vunpack.c.l.b16 %v1166
    %v1473 = vunpack.c.h.b16 %v1166
    %v1474 = vunpack.c.l.b16 %v1167
    %v1475 = vunpack.c.h.b16 %v1167
    %v1476 = vunpack.c.l.b16 %v1168
    %v1477 = vunpack.c.h.b16 %v1168
    %v1478 = vunpack.c.l.b16 %v1169
    %v1479 = vunpack.c.h.b16 %v1169
    %v1480 = vunpack.c.l.b16 %v1170
    %v1481 = vunpack.c.h.b16 %v1170
    %v1482 = vunpack.c.l.b16 %v1171
    %v1483 = vunpack.c.h.b16 %v1171
    %v1484 = vunpack.c.l.b16 %v1172
    %v1485 = vunpack.c.h.b16 %v1172
    %v1486 = vunpack.c.l.b16 %v1173
    %v1487 = vunpack.c.h.b16 %v1173
    %v1488 = vunpack.c.l.b16 %v1174
    %v1489 = vunpack.c.h.b16 %v1174
    %v1490 = vunpack.c.l.b16 %v1175
    %v1491 = vunpack.c.h.b16 %v1175
    %v1492 = vunpack.c.l.b16 %v1176
    %v1493 = vunpack.c.h.b16 %v1176
    %v1494 = vunpack.c.l.b16 %v1177
    %v1495 = vunpack.c.h.b16 %v1177
    %v1496 = vunpack.c.l.b16 %v1178
    %v1497 = vunpack.c.h.b16 %v1178
    %v1498 = vunpack.c.l.b16 %v1179
    %v1499 = vunpack.c.h.b16 %v1179
    %v1500 = vunpack.c.l.b16 %v1180
    %v1501 = vunpack.c.h.b16 %v1180
    %v1502 = vunpack.c.l.b16 %v1181
    %v1503 = vunpack.c.h.b16 %v1181
    %v1504 = vunpack.c.l.b16 %v1182
    %v1505 = vunpack.c.h.b16 %v1182
    %v1506 = vunpack.c.l.b16 %v1183
    %v1507 = vunpack.c.h.b16 %v1183
    %v1508 = vunpack.c.l.b16 %v1184
    %v1509 = vunpack.c.h.b16 %v1184
    %v1510 = vunpack.c.l.b16 %v1185
    %v1511 = vunpack.c.h.b16 %v1185
    %v1512 = vunpack.c.l.b16 %v1186
    %v1513 = vunpack.c.h.b16 %v1186
    %v1514 = vunpack.c.l.b16 %v1187
    %v1515 = vunpack.c.h.b16 %v1187
    %v1516 = vunpack.c.l.b16 %v1188
    %v1517 = vunpack.c.h.b16 %v1188
    %v1518 = vunpack.c.l.b16 %v1189
    %v1519 = vunpack.c.h.b16 %v1189
    %v1520 = vunpack.c.l.b16 %v1190
    %v1521 = vunpack.c.h.b16 %v1190
    %v1522 = vunpack.c.l.b16 %v1191
    %v1523 = vunpack.c.h.b16 %v1191
    %v1524 = vunpack.c.l.b16 %v1192
    %v1525 = vunpack.c.h.b16 %v1192
    %v1526 = vunpack.c.l.b16 %v1193
    %v1527 = vunpack.c.h.b16 %v1193
    %v1528 = vunpack.c.l.b16 %v1194
    %v1529 = vunpack.c.h.b16 %v1194
    %v1530 = vunpack.c.l.b16 %v1195
    %v1531 = vunpack.c.h.b16 %v1195
    %v1532 = vunpack.c.l.b16 %v1196
    %v1533 = vunpack.c.h.b16 %v1196
    %v1534 = vunpack.c.l.b16 %v1197
    %v1535 = vunpack.c.h.b16 %v1197
    %v1536 = vunpack.c.l.b16 %v1198
    %v1537 = vunpack.c.h.b16 %v1198
    %v1538 = vunpack.c.l.b16 %v1199
    %v1539 = vunpack.c.h.b16 %v1199
    %v1540 = vunpack.c.l.b16 %v1200
    %v1541 = vunpack.c.h.b16 %v1200
    %v1542 = vunpack.c.l.b16 %v1201
    %v1543 = vunpack.c.h.b16 %v1201
    %v1544 = vunpack.c.l.b16 %v1202
    %v1545 = vunpack.c.h.b16 %v1202
    %v1546 = vunpack.c.l.b16 %v1203
    %v1547 = vunpack.c.h.b16 %v1203
    %v1548 = vunpack.c.l.b16 %v1204
    %v1549 = vunpack.c.h.b16 %v1204
    %v1550 = vunpack.c.l.b16 %v1205
    %v1551 = vunpack.c.h.b16 %v1205
    %v1552 = vunpack.c.l.b16 %v1206
    %v1553 = vunpack.c.h.b16 %v1206
    %v1554 = vunpack.c.l.b16 %v1207
    %v1555 = vunpack.c.h.b16 %v1207
    %v1556 = vunpack.c.l.b16 %v1208
    %v1557 = vunpack.c.h.b16 %v1208
    %v1558 = vunpack.c.l.b16 %v1209
    %v1559 = vunpack.c.h.b16 %v1209
    %v1560 = vunpack.c.l.b16 %v1210
    %v1561 = vunpack.c.h.b16 %v1210
    %v1562 = vunpack.c.l.b16 %v1211
    %v1563 = vunpack.c.h.b16 %v1211
    %v1564 = vunpack.c.l.b16 %v1212
    %v1565 = vunpack.c.h.b16 %v1212
    %v1566 = vunpack.c.l.b16 %v1213
    %v1567 = vunpack.c.h.b16 %v1213
    %v1568 = vunpack.c.l.b16 %v1214
    %v1569 = vunpack.c.h.b16 %v1214
    %v1570 = vunpack.c.l.b16 %v1215
    %v1571 = vunpack.c.h.b16 %v1215
    %v1572 = vunpack.c.l.b16 %v1216
    %v1573 = vunpack.c.h.b16 %v1216
    %v1574 = vunpack.c.l.b16 %v1217
    %v1575 = vunpack.c.h.b16 %v1217
    %v1576 = vunpack.c.l.b16 %v1218
    %v1577 = vunpack.c.h.b16 %v1218
    %v1578 = vunpack.c.l.b16 %v1219
    %v1579 = vunpack.c.h.b16 %v1219
    %v1580 = vunpack.c.l.b16 %v1220
    %v1581 = vunpack.c.h.b16 %v1220
    %v1582 = vunpack.c.l.b16 %v1221
    %v1583 = vunpack.c.h.b16 %v1221
    %v1584 = vunpack.c.l.b16 %v1222
    %v1585 = vunpack.c.h.b16 %v1222
    %v1586 = vunpack.c.l.b16 %v1223
    %v1587 = vunpack.c.h.b16 %v1223
    %v1588 = vunpack.c.l.b16 %v1224
    %v1589 = vunpack.c.h.b16 %v1224
    %v1590 = vunpack.c.l.b16 %v1225
    %v1591 = vunpack.c.h.b16 %v1225
    %v1592 = vunpack.c.l.b16 %v1226
    %v1593 = vunpack.c.h.b16 %v1226
    %v1594 = vunpack.c.l.b16 %v1227
    %v1595 = vunpack.c.h.b16 %v1227
    %v1596 = vunpack.c.l.b16 %v1228
    %v1597 = vunpack.c.h.b16 %v1228
    %v1598 = vunpack.c.l.b16 %v1229
    %v1599 = vunpack.c.h.b16 %v1229
    %v1600 = vunpack.c.l.b16 %v1230
    %v1601 = vunpack.c.h.b16 %v1230
    %v1602 = vunpack.c.l.b16 %v1231
    %v1603 = vunpack.c.h.b16 %v1231
    %v1604 = vunpack.c.l.b16 %v1232
    %v1605 = vunpack.c.h.b16 %v1232
    %v1606 = vunpack.c.l.b16 %v1233
    %v1607 = vunpack.c.h.b16 %v1233
    %v1608 = vunpack.c.l.b16 %v1234
    %v1609 = vunpack.c.h.b16 %v1234
    %v1610 = vunpack.c.l.b16 %v1235
    %v1611 = vunpack.c.h.b16 %v1235
    %v1612 = vunpack.c.l.b16 %v1236
    %v1613 = vunpack.c.h.b16 %v1236
    %v1614 = vunpack.c.l.b16 %v1237
    %v1615 = vunpack.c.h.b16 %v1237
    %v1616 = vunpack.c.l.b16 %v1238
    %v1617 = vunpack.c.h.b16 %v1238
    %v1618 = vunpack.c.l.b16 %v1239
    %v1619 = vunpack.c.h.b16 %v1239
    %v1620 = vunpack.c.l.b16 %v1240
    %v1621 = vunpack.c.h.b16 %v1240
    %v1622 = vunpack.c.l.b16 %v1241
    %v1623 = vunpack.c.h.b16 %v1241
    %v1624 = vunpack.c.l.b16 %v1242
    %v1625 = vunpack.c.h.b16 %v1242
    %v1626 = vunpack.c.l.b16 %v1243
    %v1627 = vunpack.c.h.b16 %v1243
    %v1628 = vunpack.c.l.b16 %v1244
    %v1629 = vunpack.c.h.b16 %v1244
    %v1630 = vunpack.c.l.b16 %v1245
    %v1631 = vunpack.c.h.b16 %v1245
    %v1632 = vunpack.c.l.b16 %v1246
    %v1633 = vunpack.c.h.b16 %v1246
    %v1634 = vunpack.c.l.b16 %v1247
    %v1635 = vunpack.c.h.b16 %v1247
    %v1636 = vunpack.c.l.b16 %v1248
    %v1637 = vunpack.c.h.b16 %v1248
    %v1638 = vunpack.c.l.b16 %v1249
    %v1639 = vunpack.c.h.b16 %v1249
    %v1640 = vunpack.c.l.b16 %v1250
    %v1641 = vunpack.c.h.b16 %v1250
    %v1642 = vunpack.c.l.b16 %v1251
    %v1643 = vunpack.c.h.b16 %v1251
    %v1644 = vunpack.c.l.b16 %v1252
    %v1645 = vunpack.c.h.b16 %v1252
    %v1646 = vunpack.c.l.b16 %v1253
    %v1647 = vunpack.c.h.b16 %v1253
    %v1648 = vunpack.c.l.b16 %v1254
    %v1649 = vunpack.c.h.b16 %v1254
    %v1650 = vunpack.c.l.b16 %v1255
    %v1651 = vunpack.c.h.b16 %v1255
    %v1652 = vunpack.c.l.b16 %v1256
    %v1653 = vunpack.c.h.b16 %v1256
    %v1654 = vunpack.c.l.b16 %v1257
    %v1655 = vunpack.c.h.b16 %v1257
    %v1656 = vunpack.c.l.b16 %v1258
    %v1657 = vunpack.c.h.b16 %v1258
    %v1658 = vunpack.c.l.b16 %v1259
    %v1659 = vunpack.c.h.b16 %v1259
    %v1660 = vunpack.c.l.b16 %v1260
    %v1661 = vunpack.c.h.b16 %v1260
    %v1662 = vunpack.c.l.b16 %v1261
    %v1663 = vunpack.c.h.b16 %v1261
    %v1664 = vunpack.c.l.b16 %v1262
    %v1665 = vunpack.c.h.b16 %v1262
    %v1666 = vunpack.c.l.b16 %v1263
    %v1667 = vunpack.c.h.b16 %v1263
    %v1668 = vunpack.c.l.b16 %v1264
    %v1669 = vunpack.c.h.b16 %v1264
    %v1670 = vunpack.c.l.b16 %v1265
    %v1671 = vunpack.c.h.b16 %v1265
    %v1672 = vunpack.c.l.b16 %v1266
    %v1673 = vunpack.c.h.b16 %v1266
    %v1674 = vpack.c.b16 %v1422, %v1418
    %v1675 = vpack.c.b16 %v1423, %v1419
    %v1676 = vpack.c.b16 %v1424, %v1420
    %v1677 = vpack.c.b16 %v1425, %v1421
    %v1678 = vpack.c.b16 %v1430, %v1426
    %v1679 = vpack.c.b16 %v1431, %v1427
    %v1680 = vpack.c.b16 %v1432, %v1428
    %v1681 = vpack.c.b16 %v1433, %v1429
    %v1682 = vpack.c.b16 %v1438, %v1434
    %v1683 = vpack.c.b16 %v1439, %v1435
    %v1684 = vpack.c.b16 %v1440, %v1436
    %v1685 = vpack.c.b16 %v1441, %v1437
    %v1686 = vpack.c.b16 %v1446, %v1442
    %v1687 = vpack.c.b16 %v1447, %v1443
    %v1688 = vpack.c.b16 %v1448, %v1444
    %v1689 = vpack.c.b16 %v1449, %v1445
    %v1690 = vpack.c.b16 %v1454, %v1450
    %v1691 = vpack.c.b16 %v1455, %v1451
    %v1692 = vpack.c.b16 %v1456, %v1452
    %v1693 = vpack.c.b16 %v1457, %v1453
    %v1694 = vpack.c.b16 %v1462, %v1458
    %v1695 = vpack.c.b16 %v1463, %v1459
    %v1696 = vpack.c.b16 %v1464, %v1460
    %v1697 = vpack.c.b16 %v1465, %v1461
    %v1698 = vpack.c.b16 %v1470, %v1466
    %v1699 = vpack.c.b16 %v1471, %v1467
    %v1700 = vpack.c.b16 %v1472, %v1468
    %v1701 = vpack.c.b16 %v1473, %v1469
    %v1702 = vpack.c.b16 %v1478, %v1474
    %v1703 = vpack.c.b16 %v1479, %v1475
    %v1704 = vpack.c.b16 %v1480, %v1476
    %v1705 = vpack.c.b16 %v1481, %v1477
    %v1706 = vpack.c.b16 %v1486, %v1482
    %v1707 = vpack.c.b16 %v1487, %v1483
    %v1708 = vpack.c.b16 %v1488, %v1484
    %v1709 = vpack.c.b16 %v1489, %v1485
    %v1710 = vpack.c.b16 %v1494, %v1490
    %v1711 = vpack.c.b16 %v1495, %v1491
    %v1712 = vpack.c.b16 %v1496, %v1492
    %v1713 = vpack.c.b16 %v1497, %v1493
    %v1714 = vpack.c.b16 %v1502, %v1498
    %v1715 = vpack.c.b16 %v1503, %v1499
    %v1716 = vpack.c.b16 %v1504, %v1500
    %v1717 = vpack.c.b16 %v1505, %v1501
    %v1718 = vpack.c.b16 %v1510, %v1506
    %v1719 = vpack.c.b16 %v1511, %v1507
    %v1720 = vpack.c.b16 %v1512, %v1508
    %v1721 = vpack.c.b16 %v1513, %v1509
    %v1722 = vpack.c.b16 %v1518, %v1514
    %v1723 = vpack.c.b16 %v1519, %v1515
    %v1724 = vpack.c.b16 %v1520, %v1516
    %v1725 = vpack.c.b16 %v1521, %v1517
    %v1726 = vpack.c.b16 %v1526, %v1522
    %v1727 = vpack.c.b16 %v1527, %v1523
    %v1728 = vpack.c.b16 %v1528, %v1524
    %v1729 = vpack.c.b16 %v1529, %v1525
    %v1730 = vpack.c.b16 %v1534, %v1530
    %v1731 = vpack.c.b16 %v1535, %v1531
    %v1732 = vpack.c.b16 %v1536, %v1532
    %v1733 = vpack.c.b16 %v1537, %v1533
    %v1734 = vpack.c.b16 %v1542, %v1538
    %v1735 = vpack.c.b16 %v1543, %v1539
    %v1736 = vpack.c.b16 %v1544, %v1540
    %v1737 = vpack.c.b16 %v1545, %v1541
    %v1738 = vpack.c.b16 %v1550, %v1546
    %v1739 = vpack.c.b16 %v1551, %v1547
    %v1740 = vpack.c.b16 %v1552, %v1548
    %v1741 = vpack.c.b16 %v1553, %v1549
    %v1742 = vpack.c.b16 %v1558, %v1554
    %v1743 = vpack.c.b16 %v1559, %v1555
    %v1744 = vpack.c.b16 %v1560, %v1556
    %v1745 = vpack.c.b16 %v1561, %v1557
    %v1746 = vpack.c.b16 %v1566, %v1562
    %v1747 = vpack.c.b16 %v1567, %v1563
    %v1748 = vpack.c.b16 %v1568, %v1564
    %v1749 = vpack.c.b16 %v1569, %v1565
    %v1750 = vpack.c.b16 %v1574, %v1570
    %v1751 = vpack.c.b16 %v1575, %v1571
    %v1752 = vpack.c.b16 %v1576, %v1572
    %v1753 = vpack.c.b16 %v1577, %v1573
    %v1754 = vpack.c.b16 %v1582, %v1578
    %v1755 = vpack.c.b16 %v1583, %v1579
    %v1756 = vpack.c.b16 %v1584, %v1580
    %v1757 = vpack.c.b16 %v1585, %v1581
    %v1758 = vpack.c.b16 %v1590, %v1586
    %v1759 = vpack.c.b16 %v1591, %v1587
    %v1760 = vpack.c.b16 %v1592, %v1588
    %v1761 = vpack.c.b16 %v1593, %v1589
    %v1762 = vpack.c.b16 %v1598, %v1594
    %v1763 = vpack.c.b16 %v1599, %v1595
    %v1764 = vpack.c.b16 %v1600, %v1596
    %v1765 = vpack.c.b16 %v1601, %v1597
    %v1766 = vpack.c.b16 %v1606, %v1602
    %v1767 = vpack.c.b16 %v1607, %v1603
    %v1768 = vpack.c.b16 %v1608, %v1604
    %v1769 = vpack.c.b16 %v1609, %v1605
    %v1770 = vpack.c.b16 %v1614, %v1610
    %v1771 = vpack.c.b16 %v1615, %v1611
    %v1772 = vpack.c.b16 %v1616, %v1612
    %v1773 = vpack.c.b16 %v1617, %v1613
    %v1774 = vpack.c.b16 %v1622, %v1618
    %v1775 = vpack.c.b16 %v1623, %v1619
    %v1776 = vpack.c.b16 %v1624, %v1620
    %v1777 = vpack.c.b16 %v1625, %v1621
    %v1778 = vpack.c.b16 %v1630, %v1626
    %v1779 = vpack.c.b16 %v1631, %v1627
    %v1780 = vpack.c.b16 %v1632, %v1628
    %v1781 = vpack.c.b16 %v1633, %v1629
    %v1782 = vpack.c.b16 %v1638, %v1634
    %v1783 = vpack.c.b16 %v1639, %v1635
    %v1784 = vpack.c.b16 %v1640, %v1636
    %v1785 = vpack.c.b16 %v1641, %v1637
    %v1786 = vpack.c.b16 %v1646, %v1642
    %v1787 = vpack.c.b16 %v1647, %v1643
    %v1788 = vpack.c.b16 %v1648, %v1644
    %v1789 = vpack.c.b16 %v1649, %v1645
    %v1790 = vpack.c.b16 %v1654, %v1650
    %v1791 = vpack.c.b16 %v1655, %v1651
    %v1792 = vpack.c.b16 %v1656, %v1652
    %v1793 = vpack.c.b16 %v1657, %v1653
    %v1794 = vpack.c.b16 %v1662, %v1658
    %v1795 = vpack.c.b16 %v1663, %v1659
    %v1796 = vpack.c.b16 %v1664, %v1660
    %v1797 = vpack.c.b16 %v1665, %v1661
    %v1798 = vpack.c.b16 %v1670, %v1666
    %v1799 = vpack.c.b16 %v1671, %v1667
    %v1800 = vpack.c.b16 %v1672, %v1668
    %v1801 = vpack.c.b16 %v1673, %v1669
    %1930 = vmatprep.subr.bf16.mxu0 %v1675
    %1931 = vmatpush1.bf16.msra.mxu0 %v1674
    %1932 = vmatprep.subr.bf16.mxu0 %v1679
    %1933 = vmatpush1.bf16.msra.mxu0 %v1678
    %1934 = vmatprep.subr.bf16.mxu0 %v1683
    %1935 = vmatpush1.bf16.msra.mxu0 %v1682
    %1936 = vmatprep.subr.bf16.mxu0 %v1687
    %1937 = vmatpush1.bf16.msra.mxu0 %v1686
    %1938 = vmatprep.subr.bf16.mxu0 %v1691
    %1939 = vmatpush1.bf16.msra.mxu0 %v1690
    %1940 = vmatprep.subr.bf16.mxu0 %v1695
    %1941 = vmatpush1.bf16.msra.mxu0 %v1694
    %1942 = vmatprep.subr.bf16.mxu0 %v1699
    %1943 = vmatpush1.bf16.msra.mxu0 %v1698
    %1944 = vmatprep.subr.bf16.mxu0 %v1703
    %1945 = vmatpush1.bf16.msra.mxu0 %v1702
    %1946 = vmatprep.subr.bf16.mxu0 %v1707
    %1947 = vmatpush1.bf16.msra.mxu0 %v1706
    %1948 = vmatprep.subr.bf16.mxu0 %v1711
    %1949 = vmatpush1.bf16.msra.mxu0 %v1710
    %1950 = vmatprep.subr.bf16.mxu0 %v1715
    %1951 = vmatpush1.bf16.msra.mxu0 %v1714
    %1952 = vmatprep.subr.bf16.mxu0 %v1719
    %1953 = vmatpush1.bf16.msra.mxu0 %v1718
    %1954 = vmatprep.subr.bf16.mxu0 %v1723
    %1955 = vmatpush1.bf16.msra.mxu0 %v1722
    %1956 = vmatprep.subr.bf16.mxu0 %v1727
    %1957 = vmatpush1.bf16.msra.mxu0 %v1726
    %1958 = vmatprep.subr.bf16.mxu0 %v1731
    %1959 = vmatpush1.bf16.msra.mxu0 %v1730
    %1960 = vmatprep.subr.bf16.mxu0 %v1735
    %1961 = vmatpush1.bf16.msra.mxu0 %v1734
    %1962 = vmatprep.mubr.bf16.mxu0 %v1135
    %1963 = vmatmul.mubr.bf16.gmra.mrb[0].mxu0 %v1134
    %v1964 = vpop.f32.mrb[0].mxu0
    %v1965 = vadd.f32 %v1273, %v1964
    %v1966 = vpop.f32.mrb[0].mxu0
    %v1967 = vadd.f32 %v1277, %v1966
    %v1968 = vpop.f32.mrb[0].mxu0
    %v1969 = vpop.f32.mrb[0].mxu0
    %1970 = vdwg.mxu0
    %1971 = vmatprep.subr.bf16.mxu0 %v1739
    %1972 = vmatpush1.bf16.msra.mxu0 %v1738
    %1973 = vmatprep.subr.bf16.mxu0 %v1743
    %1974 = vmatpush1.bf16.msra.mxu0 %v1742
    %1975 = vmatprep.subr.bf16.mxu0 %v1747
    %1976 = vmatpush1.bf16.msra.mxu0 %v1746
    %1977 = vmatprep.subr.bf16.mxu0 %v1751
    %1978 = vmatpush1.bf16.msra.mxu0 %v1750
    %1979 = vmatprep.subr.bf16.mxu0 %v1755
    %1980 = vmatpush1.bf16.msra.mxu0 %v1754
    %1981 = vmatprep.subr.bf16.mxu0 %v1759
    %1982 = vmatpush1.bf16.msra.mxu0 %v1758
    %1983 = vmatprep.subr.bf16.mxu0 %v1763
    %1984 = vmatpush1.bf16.msra.mxu0 %v1762
    %1985 = vmatprep.subr.bf16.mxu0 %v1767
    %1986 = vmatpush1.bf16.msra.mxu0 %v1766
    %1987 = vmatprep.subr.bf16.mxu0 %v1771
    %1988 = vmatpush1.bf16.msra.mxu0 %v1770
    %1989 = vmatprep.subr.bf16.mxu0 %v1775
    %1990 = vmatpush1.bf16.msra.mxu0 %v1774
    %1991 = vmatprep.subr.bf16.mxu0 %v1779
    %1992 = vmatpush1.bf16.msra.mxu0 %v1778
    %1993 = vmatprep.subr.bf16.mxu0 %v1783
    %1994 = vmatpush1.bf16.msra.mxu0 %v1782
    %1995 = vmatprep.subr.bf16.mxu0 %v1787
    %1996 = vmatpush1.bf16.msra.mxu0 %v1786
    %1997 = vmatprep.subr.bf16.mxu0 %v1791
    %1998 = vmatpush1.bf16.msra.mxu0 %v1790
    %1999 = vmatprep.subr.bf16.mxu0 %v1795
    %2000 = vmatpush1.bf16.msra.mxu0 %v1794
    %2001 = vmatprep.subr.bf16.mxu0 %v1799
    %2002 = vmatpush1.bf16.msra.mxu0 %v1798
    %2003 = vmatprep.mubr.bf16.mxu0 %v1137
    %2004 = vmatmul.mubr.bf16.gmra.mrb[0].mxu0 %v1136
    %v2005 = vpop.f32.mrb[0].mxu0
    %v2006 = vadd.f32 %v1965, %v2005
    %v2007 = vpop.f32.mrb[0].mxu0
    %v2008 = vadd.f32 %v1967, %v2007
    %v2009 = vpop.f32.mrb[0].mxu0
    %v2010 = vpop.f32.mrb[0].mxu0
    %2011 = vdwg.mxu0
    %2012 = vmatprep.subr.bf16.mxu0 %v1677
    %2013 = vmatpush1.bf16.msra.mxu0 %v1676
    %2014 = vmatprep.subr.bf16.mxu0 %v1681
    %2015 = vmatpush1.bf16.msra.mxu0 %v1680
    %2016 = vmatprep.subr.bf16.mxu0 %v1685
    %2017 = vmatpush1.bf16.msra.mxu0 %v1684
    %2018 = vmatprep.subr.bf16.mxu0 %v1689
    %2019 = vmatpush1.bf16.msra.mxu0 %v1688
    %2020 = vmatprep.subr.bf16.mxu0 %v1693
    %2021 = vmatpush1.bf16.msra.mxu0 %v1692
    %2022 = vmatprep.subr.bf16.mxu0 %v1697
    %2023 = vmatpush1.bf16.msra.mxu0 %v1696
    %2024 = vmatprep.subr.bf16.mxu0 %v1701
    %2025 = vmatpush1.bf16.msra.mxu0 %v1700
    %2026 = vmatprep.subr.bf16.mxu0 %v1705
    %2027 = vmatpush1.bf16.msra.mxu0 %v1704
    %2028 = vmatprep.subr.bf16.mxu0 %v1709
    %2029 = vmatpush1.bf16.msra.mxu0 %v1708
    %2030 = vmatprep.subr.bf16.mxu0 %v1713
    %2031 = vmatpush1.bf16.msra.mxu0 %v1712
    %2032 = vmatprep.subr.bf16.mxu0 %v1717
    %2033 = vmatpush1.bf16.msra.mxu0 %v1716
    %2034 = vmatprep.subr.bf16.mxu0 %v1721
    %2035 = vmatpush1.bf16.msra.mxu0 %v1720
    %2036 = vmatprep.subr.bf16.mxu0 %v1725
    %2037 = vmatpush1.bf16.msra.mxu0 %v1724
    %2038 = vmatprep.subr.bf16.mxu0 %v1729
    %2039 = vmatpush1.bf16.msra.mxu0 %v1728
    %2040 = vmatprep.subr.bf16.mxu0 %v1733
    %2041 = vmatpush1.bf16.msra.mxu0 %v1732
    %2042 = vmatprep.subr.bf16.mxu0 %v1737
    %2043 = vmatpush1.bf16.msra.mxu0 %v1736
    %2044 = vmatprep.mubr.bf16.mxu0 %v1135
    %2045 = vmatmul.mubr.bf16.gmra.mrb[0].mxu0 %v1134
    %v2046 = vpop.f32.mrb[0].mxu0
    %v2047 = vadd.f32 %v1281, %v2046
    %v2048 = vpop.f32.mrb[0].mxu0
    %v2049 = vadd.f32 %v1285, %v2048
    %v2050 = vpop.f32.mrb[0].mxu0
    %v2051 = vpop.f32.mrb[0].mxu0
    %2052 = vdwg.mxu0
    %2053 = vmatprep.subr.bf16.mxu0 %v1741
    %2054 = vmatpush1.bf16.msra.mxu0 %v1740
    %2055 = vmatprep.subr.bf16.mxu0 %v1745
    %2056 = vmatpush1.bf16.msra.mxu0 %v1744
    %2057 = vmatprep.subr.bf16.mxu0 %v1749
    %2058 = vmatpush1.bf16.msra.mxu0 %v1748
    %2059 = vmatprep.subr.bf16.mxu0 %v1753
    %2060 = vmatpush1.bf16.msra.mxu0 %v1752
    %2061 = vmatprep.subr.bf16.mxu0 %v1757
    %2062 = vmatpush1.bf16.msra.mxu0 %v1756
    %2063 = vmatprep.subr.bf16.mxu0 %v1761
    %2064 = vmatpush1.bf16.msra.mxu0 %v1760
    %2065 = vmatprep.subr.bf16.mxu0 %v1765
    %2066 = vmatpush1.bf16.msra.mxu0 %v1764
    %2067 = vmatprep.subr.bf16.mxu0 %v1769
    %2068 = vmatpush1.bf16.msra.mxu0 %v1768
    %2069 = vmatprep.subr.bf16.mxu0 %v1773
    %2070 = vmatpush1.bf16.msra.mxu0 %v1772
    %2071 = vmatprep.subr.bf16.mxu0 %v1777
    %2072 = vmatpush1.bf16.msra.mxu0 %v1776
    %2073 = vmatprep.subr.bf16.mxu0 %v1781
    %2074 = vmatpush1.bf16.msra.mxu0 %v1780
    %2075 = vmatprep.subr.bf16.mxu0 %v1785
    %2076 = vmatpush1.bf16.msra.mxu0 %v1784
    %2077 = vmatprep.subr.bf16.mxu0 %v1789
    %2078 = vmatpush1.bf16.msra.mxu0 %v1788
    %2079 = vmatprep.subr.bf16.mxu0 %v1793
    %2080 = vmatpush1.bf16.msra.mxu0 %v1792
    %2081 = vmatprep.subr.bf16.mxu0 %v1797
    %2082 = vmatpush1.bf16.msra.mxu0 %v1796
    %2083 = vmatprep.subr.bf16.mxu0 %v1801
    %2084 = vmatpush1.bf16.msra.mxu0 %v1800
    %2085 = vmatprep.mubr.bf16.mxu0 %v1137
    %2086 = vmatmul.mubr.bf16.gmra.mrb[0].mxu0 %v1136
    %v2087 = vpop.f32.mrb[0].mxu0
    %v2088 = vadd.f32 %v2047, %v2087
    %v2089 = vpop.f32.mrb[0].mxu0
    %v2090 = vadd.f32 %v2049, %v2089
    %v2091 = vpop.f32.mrb[0].mxu0
    %v2092 = vpop.f32.mrb[0].mxu0
    %2093 = vdwg.mxu0
    %v2094 = vmul.f32 %v2006, 0.2
    %v2095 = vmul.f32 %v2008, 0.2
    %v2096 = vmul.f32 %v2088, 0.2
    %v2097 = vmul.f32 %v2090, 0.2
    %v2098 = vmax.f32 %v2006, %v2094
    %v2099 = vmax.f32 %v2008, %v2095
    %v2100 = vmax.f32 %v2088, %v2096
    %v2101 = vmax.f32 %v2090, %v2097
    %v2102 = vpack.c.bf16 %v2098, %v2098
    %v2103 = vpack.c.bf16 %v2099, %v2099
    %v2104 = vpack.c.bf16 %v2100, %v2100
    %v2105 = vpack.c.bf16 %v2101, %v2101
    %v2106 = vld [vmem:[%s4] sm:$0xf]
    %v2107 = vld [vmem:[%s4 + $0x4] sm:$0xf]
    %v2108 = vld [vmem:[%s4 + $0x8] sm:$0xf]
    %v2109 = vld [vmem:[%s4 + $0xc] sm:$0xf]
    %v2110 = vld [vmem:[%s4 + $0x10] sm:$0xf]
    %v2111 = vld [vmem:[%s4 + $0x14] sm:$0xf]
    %v2112 = vld [vmem:[%s4 + $0x18] sm:$0xf]
    %v2113 = vld [vmem:[%s4 + $0x1c] sm:$0xf]
    %v2114 = vld [vmem:[%s4 + $0x20] sm:$0xf]
    %v2115 = vld [vmem:[%s4 + $0x24] sm:$0xf]
    %v2116 = vld [vmem:[%s4 + $0x28] sm:$0xf]
    %v2117 = vld [vmem:[%s4 + $0x2c] sm:$0xf]
    %v2118 = vld [vmem:[%s4 + $0x30] sm:$0xf]
    %v2119 = vld [vmem:[%s4 + $0x34] sm:$0xf]
    %v2120 = vld [vmem:[%s4 + $0x38] sm:$0xf]
    %v2121 = vld [vmem:[%s4 + $0x3c] sm:$0xf]
    %v2122 = vld [vmem:[%s4 + $0x40] sm:$0xf]
    %v2123 = vld [vmem:[%s4 + $0x44] sm:$0xf]
    %v2124 = vld [vmem:[%s4 + $0x48] sm:$0xf]
    %v2125 = vld [vmem:[%s4 + $0x4c] sm:$0xf]
    %v2126 = vld [vmem:[%s4 + $0x50] sm:$0xf]
    %v2127 = vld [vmem:[%s4 + $0x54] sm:$0xf]
    %v2128 = vld [vmem:[%s4 + $0x58] sm:$0xf]
    %v2129 = vld [vmem:[%s4 + $0x5c] sm:$0xf]
    %v2130 = vld [vmem:[%s4 + $0x60] sm:$0xf]
    %v2131 = vld [vmem:[%s4 + $0x64] sm:$0xf]
    %v2132 = vld [vmem:[%s4 + $0x68] sm:$0xf]
    %v2133 = vld [vmem:[%s4 + $0x6c] sm:$0xf]
    %v2134 = vld [vmem:[%s4 + $0x70] sm:$0xf]
    %v2135 = vld [vmem:[%s4 + $0x74] sm:$0xf]
    %v2136 = vld [vmem:[%s4 + $0x78] sm:$0xf]
    %v2137 = vld [vmem:[%s4 + $0x7c] sm:$0xf]
    %v2138 = vld [vmem:[%s4 + $0x80] sm:$0xf]
    %v2139 = vld [vmem:[%s4 + $0x84] sm:$0xf]
    %v2140 = vld [vmem:[%s4 + $0x88] sm:$0xf]
    %v2141 = vld [vmem:[%s4 + $0x8c] sm:$0xf]
    %v2142 = vld [vmem:[%s4 + $0x90] sm:$0xf]
    %v2143 = vld [vmem:[%s4 + $0x94] sm:$0xf]
    %v2144 = vld [vmem:[%s4 + $0x98] sm:$0xf]
    %v2145 = vld [vmem:[%s4 + $0x9c] sm:$0xf]
    %v2146 = vld [vmem:[%s4 + $0xa0] sm:$0xf]
    %v2147 = vld [vmem:[%s4 + $0xa4] sm:$0xf]
    %v2148 = vld [vmem:[%s4 + $0xa8] sm:$0xf]
    %v2149 = vld [vmem:[%s4 + $0xac] sm:$0xf]
    %v2150 = vld [vmem:[%s4 + $0xb0] sm:$0xf]
    %v2151 = vld [vmem:[%s4 + $0xb4] sm:$0xf]
    %v2152 = vld [vmem:[%s4 + $0xb8] sm:$0xf]
    %v2153 = vld [vmem:[%s4 + $0xbc] sm:$0xf]
    %v2154 = vld [vmem:[%s4 + $0xc0] sm:$0xf]
    %v2155 = vld [vmem:[%s4 + $0xc4] sm:$0xf]
    %v2156 = vld [vmem:[%s4 + $0xc8] sm:$0xf]
    %v2157 = vld [vmem:[%s4 + $0xcc] sm:$0xf]
    %v2158 = vld [vmem:[%s4 + $0xd0] sm:$0xf]
    %v2159 = vld [vmem:[%s4 + $0xd4] sm:$0xf]
    %v2160 = vld [vmem:[%s4 + $0xd8] sm:$0xf]
    %v2161 = vld [vmem:[%s4 + $0xdc] sm:$0xf]
    %v2162 = vld [vmem:[%s4 + $0xe0] sm:$0xf]
    %v2163 = vld [vmem:[%s4 + $0xe4] sm:$0xf]
    %v2164 = vld [vmem:[%s4 + $0xe8] sm:$0xf]
    %v2165 = vld [vmem:[%s4 + $0xec] sm:$0xf]
    %v2166 = vld [vmem:[%s4 + $0xf0] sm:$0xf]
    %v2167 = vld [vmem:[%s4 + $0xf4] sm:$0xf]
    %v2168 = vld [vmem:[%s4 + $0xf8] sm:$0xf]
    %v2169 = vld [vmem:[%s4 + $0xfc] sm:$0xf]
    %v2170 = vld [vmem:[%s5 + $0x2] sm:$0x1]
    %v2171 = vlaneseq
    %v2172 = vshrl.u32 %v2171, 7
    %v2173 = vsub.s32 0, %v2172
    %v2174 = vrot.slane %v2170, %v2173
    %v2239 = vunpack.c.l.b16 %v2106
    %v2240 = vunpack.c.l.b16 %v2107
    %v2241 = vunpack.c.l.b16 %v2108
    %v2242 = vunpack.c.l.b16 %v2109
    %v2243 = vunpack.c.l.b16 %v2110
    %v2244 = vunpack.c.l.b16 %v2111
    %v2245 = vunpack.c.l.b16 %v2112
    %v2246 = vunpack.c.l.b16 %v2113
    %v2247 = vunpack.c.l.b16 %v2114
    %v2248 = vunpack.c.l.b16 %v2115
    %v2249 = vunpack.c.l.b16 %v2116
    %v2250 = vunpack.c.l.b16 %v2117
    %v2251 = vunpack.c.l.b16 %v2118
    %v2252 = vunpack.c.l.b16 %v2119
    %v2253 = vunpack.c.l.b16 %v2120
    %v2254 = vunpack.c.l.b16 %v2121
    %v2255 = vunpack.c.l.b16 %v2122
    %v2256 = vunpack.c.l.b16 %v2123
    %v2257 = vunpack.c.l.b16 %v2124
    %v2258 = vunpack.c.l.b16 %v2125
    %v2259 = vunpack.c.l.b16 %v2126
    %v2260 = vunpack.c.l.b16 %v2127
    %v2261 = vunpack.c.l.b16 %v2128
    %v2262 = vunpack.c.l.b16 %v2129
    %v2263 = vunpack.c.l.b16 %v2130
    %v2264 = vunpack.c.l.b16 %v2131
    %v2265 = vunpack.c.l.b16 %v2132
    %v2266 = vunpack.c.l.b16 %v2133
    %v2267 = vunpack.c.l.b16 %v2134
    %v2268 = vunpack.c.l.b16 %v2135
    %v2269 = vunpack.c.l.b16 %v2136
    %v2270 = vunpack.c.l.b16 %v2137
    %v2271 = vunpack.c.l.b16 %v2138
    %v2272 = vunpack.c.l.b16 %v2139
    %v2273 = vunpack.c.l.b16 %v2140
    %v2274 = vunpack.c.l.b16 %v2141
    %v2275 = vunpack.c.l.b16 %v2142
    %v2276 = vunpack.c.l.b16 %v2143
    %v2277 = vunpack.c.l.b16 %v2144
    %v2278 = vunpack.c.l.b16 %v2145
    %v2279 = vunpack.c.l.b16 %v2146
    %v2280 = vunpack.c.l.b16 %v2147
    %v2281 = vunpack.c.l.b16 %v2148
    %v2282 = vunpack.c.l.b16 %v2149
    %v2283 = vunpack.c.l.b16 %v2150
    %v2284 = vunpack.c.l.b16 %v2151
    %v2285 = vunpack.c.l.b16 %v2152
    %v2286 = vunpack.c.l.b16 %v2153
    %v2287 = vunpack.c.l.b16 %v2154
    %v2288 = vunpack.c.l.b16 %v2155
    %v2289 = vunpack.c.l.b16 %v2156
    %v2290 = vunpack.c.l.b16 %v2157
    %v2291 = vunpack.c.l.b16 %v2158
    %v2292 = vunpack.c.l.b16 %v2159
    %v2293 = vunpack.c.l.b16 %v2160
    %v2294 = vunpack.c.l.b16 %v2161
    %v2295 = vunpack.c.l.b16 %v2162
    %v2296 = vunpack.c.l.b16 %v2163
    %v2297 = vunpack.c.l.b16 %v2164
    %v2298 = vunpack.c.l.b16 %v2165
    %v2299 = vunpack.c.l.b16 %v2166
    %v2300 = vunpack.c.l.b16 %v2167
    %v2301 = vunpack.c.l.b16 %v2168
    %v2302 = vunpack.c.l.b16 %v2169
    %v2303 = vpack.c.b16 %v2240, %v2239
    %v2304 = vpack.c.b16 %v2242, %v2241
    %v2305 = vpack.c.b16 %v2244, %v2243
    %v2306 = vpack.c.b16 %v2246, %v2245
    %v2307 = vpack.c.b16 %v2248, %v2247
    %v2308 = vpack.c.b16 %v2250, %v2249
    %v2309 = vpack.c.b16 %v2252, %v2251
    %v2310 = vpack.c.b16 %v2254, %v2253
    %v2311 = vpack.c.b16 %v2256, %v2255
    %v2312 = vpack.c.b16 %v2258, %v2257
    %v2313 = vpack.c.b16 %v2260, %v2259
    %v2314 = vpack.c.b16 %v2262, %v2261
    %v2315 = vpack.c.b16 %v2264, %v2263
    %v2316 = vpack.c.b16 %v2266, %v2265
    %v2317 = vpack.c.b16 %v2268, %v2267
    %v2318 = vpack.c.b16 %v2270, %v2269
    %v2319 = vpack.c.b16 %v2272, %v2271
    %v2320 = vpack.c.b16 %v2274, %v2273
    %v2321 = vpack.c.b16 %v2276, %v2275
    %v2322 = vpack.c.b16 %v2278, %v2277
    %v2323 = vpack.c.b16 %v2280, %v2279
    %v2324 = vpack.c.b16 %v2282, %v2281
    %v2325 = vpack.c.b16 %v2284, %v2283
    %v2326 = vpack.c.b16 %v2286, %v2285
    %v2327 = vpack.c.b16 %v2288, %v2287
    %v2328 = vpack.c.b16 %v2290, %v2289
    %v2329 = vpack.c.b16 %v2292, %v2291
    %v2330 = vpack.c.b16 %v2294, %v2293
    %v2331 = vpack.c.b16 %v2296, %v2295
    %v2332 = vpack.c.b16 %v2298, %v2297
    %v2333 = vpack.c.b16 %v2300, %v2299
    %v2334 = vpack.c.b16 %v2302, %v2301
    %2367 = vmatprep.subr.bf16.mxu0 0
    %2368 = vmatpush1.bf16.msra.mxu0 %v2303
    %2369 = vmatprep.subr.bf16.mxu0 0
    %2370 = vmatpush1.bf16.msra.mxu0 %v2304
    %2371 = vmatprep.subr.bf16.mxu0 0
    %2372 = vmatpush1.bf16.msra.mxu0 %v2305
    %2373 = vmatprep.subr.bf16.mxu0 0
    %2374 = vmatpush1.bf16.msra.mxu0 %v2306
    %2375 = vmatprep.subr.bf16.mxu0 0
    %2376 = vmatpush1.bf16.msra.mxu0 %v2307
    %2377 = vmatprep.subr.bf16.mxu0 0
    %2378 = vmatpush1.bf16.msra.mxu0 %v2308
    %2379 = vmatprep.subr.bf16.mxu0 0
    %2380 = vmatpush1.bf16.msra.mxu0 %v2309
    %2381 = vmatprep.subr.bf16.mxu0 0
    %2382 = vmatpush1.bf16.msra.mxu0 %v2310
    %2383 = vmatprep.subr.bf16.mxu0 0
    %2384 = vmatpush1.bf16.msra.mxu0 %v2311
    %2385 = vmatprep.subr.bf16.mxu0 0
    %2386 = vmatpush1.bf16.msra.mxu0 %v2312
    %2387 = vmatprep.subr.bf16.mxu0 0
    %2388 = vmatpush1.bf16.msra.mxu0 %v2313
    %2389 = vmatprep.subr.bf16.mxu0 0
    %2390 = vmatpush1.bf16.msra.mxu0 %v2314
    %2391 = vmatprep.subr.bf16.mxu0 0
    %2392 = vmatpush1.bf16.msra.mxu0 %v2315
    %2393 = vmatprep.subr.bf16.mxu0 0
    %2394 = vmatpush1.bf16.msra.mxu0 %v2316
    %2395 = vmatprep.subr.bf16.mxu0 0
    %2396 = vmatpush1.bf16.msra.mxu0 %v2317
    %2397 = vmatprep.subr.bf16.mxu0 0
    %2398 = vmatpush1.bf16.msra.mxu0 %v2318
    %2399 = vmatprep.mubr.bf16.mxu0 %v2103
    %2400 = vmatmul.mubr.bf16.gmra.mrb[0].mxu0 %v2102
    %v2401 = vpop.f32.mrb[0].mxu0
    %v2402 = vadd.f32 %v2174, %v2401
    %v2403 = vpop.f32.mrb[0].mxu0
    %v2404 = vpop.f32.mrb[0].mxu0
    %v2405 = vpop.f32.mrb[0].mxu0
    %2406 = vdwg.mxu0
    %2407 = vmatprep.subr.bf16.mxu0 0
    %2408 = vmatpush1.bf16.msra.mxu0 %v2319
    %2409 = vmatprep.subr.bf16.mxu0 0
    %2410 = vmatpush1.bf16.msra.mxu0 %v2320
    %2411 = vmatprep.subr.bf16.mxu0 0
    %2412 = vmatpush1.bf16.msra.mxu0 %v2321
    %2413 = vmatprep.subr.bf16.mxu0 0
    %2414 = vmatpush1.bf16.msra.mxu0 %v2322
    %2415 = vmatprep.subr.bf16.mxu0 0
    %2416 = vmatpush1.bf16.msra.mxu0 %v2323
    %2417 = vmatprep.subr.bf16.mxu0 0
    %2418 = vmatpush1.bf16.msra.mxu0 %v2324
    %2419 = vmatprep.subr.bf16.mxu0 0
    %2420 = vmatpush1.bf16.msra.mxu0 %v2325
    %2421 = vmatprep.subr.bf16.mxu0 0
    %2422 = vmatpush1.bf16.msra.mxu0 %v2326
    %2423 = vmatprep.subr.bf16.mxu0 0
    %2424 = vmatpush1.bf16.msra.mxu0 %v2327
    %2425 = vmatprep.subr.bf16.mxu0 0
    %2426 = vmatpush1.bf16.msra.mxu0 %v2328
    %2427 = vmatprep.subr.bf16.mxu0 0
    %2428 = vmatpush1.bf16.msra.mxu0 %v2329
    %2429 = vmatprep.subr.bf16.mxu0 0
    %2430 = vmatpush1.bf16.msra.mxu0 %v2330
    %2431 = vmatprep.subr.bf16.mxu0 0
    %2432 = vmatpush1.bf16.msra.mxu0 %v2331
    %2433 = vmatprep.subr.bf16.mxu0 0
    %2434 = vmatpush1.bf16.msra.mxu0 %v2332
    %2435 = vmatprep.subr.bf16.mxu0 0
    %2436 = vmatpush1.bf16.msra.mxu0 %v2333
    %2437 = vmatprep.subr.bf16.mxu0 0
    %2438 = vmatpush1.bf16.msra.mxu0 %v2334
    %2439 = vmatprep.mubr.bf16.mxu0 %v2105
    %2440 = vmatmul.mubr.bf16.gmra.mrb[0].mxu0 %v2104
    %v2441 = vpop.f32.mrb[0].mxu0
    %v2442 = vadd.f32 %v2402, %v2441
    %v2443 = vpop.f32.mrb[0].mxu0
    %v2444 = vpop.f32.mrb[0].mxu0
    %v2445 = vpop.f32.mrb[0].mxu0
    %2446 = vdwg.mxu0
    %vm2447 = vcmp.eq.s32.totalorder %v40, 0
    %v2448 = vxor.u32 %v2442, 2147483648
    %v2449 = vmul.f32 %v2448, 1.442695
    %v2450 = vpow.pop %v2449
    %v2451 = vadd.f32 %v2450, 1.0
    %v2452 = vrcp.pop %v2451
    %v2453 = vmul.f32 1.0, %v2452
    %v2454 = vsel %vm2447, %v2453, %v2442
    %vm2455 = vcmask 64512
    %2456 = vst.msk [vmem:[%s6] sm:$0xff] %vm2455, %v2454
    // Predicated region
    $region30: #{discriminator_forward.1} parent=1 // pred_check
      _
    $region31: #{discriminator_forward.1} parent=1 // pred_check_branch
      %2458 = sbr.rel (0) target = $region33
    $region32: #{discriminator_forward.1} parent=1 // pred_region
      _
    $region33: #{discriminator_forward.1} parent=1 // pred_fallthru
      _
    // Predicated region
    $region34: #{discriminator_forward.1} parent=1 // pred_check
      _
    $region35: #{discriminator_forward.1} parent=1 // pred_check_branch
      %2460 = sbr.rel (0) target = $region37
    $region36: #{discriminator_forward.1} parent=1 // pred_region
      _
    $region37: #{discriminator_forward.1} parent=1 // pred_fallthru
      _
    %2461 = vsyncpa [#allocation3], 1

</llo_original>
